<compile_context>
chip_gen: v6e
topology: v6e:2x2x1
jax: 0.10.0
libtpu: 0.0.40
codegen_flags: <defaults>
</compile_context>

<pallas_src>
import math

import jax
import jax.numpy as jnp
from jax import lax
from jax.experimental import pallas as pl
from jax.experimental.pallas import tpu as pltpu

HEADS = 4
LN_EPS = 1e-5

_VMEM = pl.BlockSpec(memory_space=pltpu.MemorySpace.VMEM)


# ----------------------------- small helpers -------------------------------

def _dot_nt(a, b):
    # a @ b.T   (a:[M,K], b:[N,K]) with f32 accumulation.
    return lax.dot_general(a, b, (((1,), (1,)), ((), ())),
                           preferred_element_type=jnp.float32)


def _dot_nn(a, b):
    # a @ b     (a:[M,K], b:[K,N]) with f32 accumulation.
    return lax.dot_general(a, b, (((1,), (0,)), ((), ())),
                           preferred_element_type=jnp.float32)


def _layer_norm(x, g, b):
    # nn.LayerNorm over the last dim, eps=1e-5 (all f32 VPU math).
    mu = jnp.mean(x, axis=-1, keepdims=True)
    var = jnp.mean((x - mu) ** 2, axis=-1, keepdims=True)
    return (x - mu) * lax.rsqrt(var + LN_EPS) * g + b


# ------------------------------ fused kernel --------------------------------

def _encoder_kernel(x_ref, l2_ref, bm_ref, hm_ref, p_ref,
                    w_qkv_ref, w_out_ref, ln1_g_ref, ln1_b_ref,
                    w1_ref, b1_ref, w2_ref, b2_ref, ln2_g_ref, ln2_b_ref,
                    out_ref):
    """All transformer blocks, fully VMEM-resident.

    x_ref      : [N, D]   residual stream (N = B*S)
    l2_ref     : [BH, N]  head-row-block selection (BH = B*heads)
    bm_ref     : [D, D]   column mod-dk fold matrix
    hm_ref     : [BH, D]  own-head column mask
    p_ref      : [N, BH]  batch broadcast matrix
    w_*_ref    : [L, ...] stacked per-layer weights (MXU weights bf16)
    out_ref    : [N, D]
    """
    bf16 = jnp.bfloat16
    L = w_qkv_ref.shape[0]

    x = x_ref[...]
    l2 = l2_ref[...]
    bm = bm_ref[...]
    hm = hm_ref[...]
    pmat = p_ref[...]

    for l in range(L):  # static unroll; L is small and weights stay resident
        # shared q/k/v projection (bias-free):  qkv = x @ w_qkv.T
        qkv = _dot_nt(x.astype(bf16), w_qkv_ref[l])            # [N, D] f32

        # Degenerate attention (see header): per-(batch, head) column-sum of
        # value, realized through the module's no-transpose head split via
        # exact f32 selection matmuls, then broadcast over the query rows.
        vsum = _dot_nn(_dot_nn(l2, qkv), bm)                   # [BH, D]
        vsum = vsum * hm                                       # keep own head's cols
        # output projection first (per batch*head row), then batch broadcast:
        # a[b*S+s, :] = (attn re-merged)[b, :] @ w_out.T   (rows equal within batch)
        a = _dot_nn(pmat, _dot_nt(vsum.astype(bf16), w_out_ref[l]))   # [N, D]

        # residual + LayerNorm1
        x1 = _layer_norm(x + a, ln1_g_ref[l], ln1_b_ref[l])

        # feed-forward: Linear -> ReLU -> Linear (bf16 MXU operands, f32 math)
        hmid = _dot_nt(x1.astype(bf16), w1_ref[l]) + b1_ref[l]
        hmid = jnp.maximum(hmid, 0.0)
        ff = _dot_nt(hmid.astype(bf16), w2_ref[l]) + b2_ref[l]

        x = _layer_norm(ff + x1, ln2_g_ref[l], ln2_b_ref[l])

    out_ref[...] = x


# ----------------------------- param packing --------------------------------

def pack_encoder_params(params):
    """Stack per-layer weights to [L, ...] and pre-cast MXU weights to bf16 once."""
    bf16 = jnp.bfloat16
    layers = params["layers"]
    stack = lambda k: jnp.stack([lp[k] for lp in layers])
    return {
        "embedding": params["embedding"],
        "pe": params["pe"],
        "w_qkv": stack("w_qkv").astype(bf16),
        "w_out": stack("w_out").astype(bf16),
        "ln1_g": stack("ln1_g"), "ln1_b": stack("ln1_b"),
        "w1": stack("w1").astype(bf16), "b1": stack("b1"),
        "w2": stack("w2").astype(bf16), "b2": stack("b2"),
        "ln2_g": stack("ln2_g"), "ln2_b": stack("ln2_b"),
    }


# ------------------------------ Encoder forward ------------------------------

def encoder_forward(packed, tokens, mask):
    # The module's output is mathematically independent of the mask (header);
    # it is accepted only for signature parity with the PyTorch module.
    del mask

    B, S = tokens.shape
    D = packed["embedding"].shape[1]
    h = HEADS
    dk = D // h
    N, BH = B * S, B * h
    assert S % h == 0, "in-kernel head relayout assumes heads | seq_len"

    # Embedding gather + positional-encoding add: tiny glue, fused by XLA.
    x = jnp.take(packed["embedding"], tokens, axis=0) + packed["pe"][:, :S]
    x2d = x.reshape(N, D).astype(jnp.float32)

    # Constant 0/1 selection matrices (constant-folded under jit, loaded into
    # VMEM once and reused by every layer inside the kernel).
    f32 = jnp.float32
    m = jnp.arange(BH)
    r = jnp.arange(N)
    c = jnp.arange(D)
    rows_per_head = S // h
    # L2[b*h+hh, b'*S+s] = [b == b'] * [s // (S/h) == hh]
    l2 = ((m[:, None] // h == r[None, :] // S)
          & ((r[None, :] % S) // rows_per_head == m[:, None] % h)).astype(f32)
    # Bm[j, c] = [j % dk == c % dk]
    bm = (c[:, None] % dk == c[None, :] % dk).astype(f32)
    # hm[b*h+hh, c] = [hh == c // dk]
    hm = (m[:, None] % h == c[None, :] // dk).astype(f32)
    # P[b*S+s, b'*h+hh] = [b == b']
    pmat = (r[:, None] // S == m[None, :] // h).astype(f32)

    out = pl.pallas_call(
        _encoder_kernel,
        out_shape=jax.ShapeDtypeStruct((N, D), jnp.float32),
        in_specs=[_VMEM] * 15,
        out_specs=_VMEM,
    )(x2d, l2, bm, hm, pmat,
      packed["w_qkv"], packed["w_out"],
      packed["ln1_g"], packed["ln1_b"],
      packed["w1"], packed["b1"],
      packed["w2"], packed["b2"],
      packed["ln2_g"], packed["ln2_b"])

    return out.reshape(B, S, D)


# --------------------------- Pure-JAX reference -----------------------------

def _layer_norm_ref(x, g, b):
    mu = jnp.mean(x, axis=-1, keepdims=True)
    var = jnp.mean((x - mu) ** 2, axis=-1, keepdims=True)
    return (x - mu) / jnp.sqrt(var + LN_EPS) * g + b


def _reference_forward(params, tokens, mask):
    B, S = tokens.shape
    h = HEADS
    x = jnp.take(params["embedding"], tokens, axis=0) + params["pe"][:, :S]
    for lp in params["layers"]:
        D = x.shape[-1]
        dk = D // h
        qkv = x @ lp["w_qkv"].T
        q = qkv.reshape(B, h, -1, dk)            # module's head split (no transpose)
        scores = jnp.einsum("bhqd,bhkd->bhqk", q, q) / math.sqrt(dk)
        scores = jnp.where(mask == 0, -1e9, scores)
        p = jax.nn.softmax(scores, axis=-1)
        # The module's exact (degenerate) einsum: sums k and v independently.
        a4 = jnp.einsum("bhqk,bhvd->bhqd", p, q)
        a = jnp.transpose(a4, (0, 2, 1, 3)).reshape(B, S, D) @ lp["w_out"].T
        x1 = _layer_norm_ref(x + a, lp["ln1_g"], lp["ln1_b"])
        ff = jnp.maximum(x1 @ lp["w1"].T + lp["b1"], 0.0) @ lp["w2"].T + lp["b2"]
        x = _layer_norm_ref(ff + x1, lp["ln2_g"], lp["ln2_b"])
    return x


# ------------------------------ Params / main --------------------------------

def make_positional_encoding(max_len, d_model):
    position = jnp.arange(max_len, dtype=jnp.float32)[:, None]
    div_term = jnp.exp(jnp.arange(0, d_model, 2, dtype=jnp.float32)
                       * (-(math.log(10000.0) / d_model)))
    pe = jnp.zeros((max_len, d_model), jnp.float32)
    pe = pe.at[:, 0::2].set(jnp.sin(position * div_term))
    pe = pe.at[:, 1::2].set(jnp.cos(position * div_term))
    return pe[None]  # [1, max_len, d_model]


def init_params(key, vocab, max_len, d_model, n_layers, d_ff):
    n_per = 9
    keys = jax.random.split(key, 1 + n_per * n_layers)
    params = {
        "embedding": 0.02 * jax.random.normal(keys[0], (vocab, d_model), jnp.float32),
        "pe": make_positional_encoding(max_len, d_model),
        "layers": [],
    }
    for l in range(n_layers):
        k = keys[1 + n_per * l: 1 + n_per * (l + 1)]
        params["layers"].append({
            "w_qkv": 0.05 * jax.random.normal(k[0], (d_model, d_model), jnp.float32),
            "w_out": 0.05 * jax.random.normal(k[1], (d_model, d_model), jnp.float32),
            "ln1_g": 1.0 + 0.1 * jax.random.normal(k[2], (1, d_model), jnp.float32),
            "ln1_b": 0.1 * jax.random.normal(k[3], (1, d_model), jnp.float32),
            "w1": 0.05 * jax.random.normal(k[4], (d_ff, d_model), jnp.float32),
            "b1": 0.01 * jax.random.normal(k[5], (1, d_ff), jnp.float32),
            "w2": 0.05 * jax.random.normal(k[6], (d_model, d_ff), jnp.float32),
            "b2": 0.01 * jax.random.normal(k[7], (1, d_model), jnp.float32),
            "ln2_g": 1.0 + 0.1 * jax.random.normal(k[8], (1, d_model), jnp.float32),
            "ln2_b": jnp.zeros((1, d_model), jnp.float32),
        })
    return params


if __name__ == "__main__":
    SRC_VOCAB = 50
    MAX_SEQ_LEN = 16
    D_MODEL = 32
    N_LAYERS = 2
    D_FF = 64
    B, S = 2, 8  # batch, sequence

    key = jax.random.PRNGKey(0)
    kp, kt = jax.random.split(key)
    params = init_params(kp, SRC_VOCAB, MAX_SEQ_LEN, D_MODEL, N_LAYERS, D_FF)
    packed = pack_encoder_params(params)   # bf16 pre-cast + layer stacking, once

    tokens = jax.random.randint(kt, (B, S), 0, SRC_VOCAB, dtype=jnp.int32)
    # Padding-style mask [B, 1, 1, S]: 1 = attend, 0 = masked.
    mask = jnp.ones((B, 1, 1, S), jnp.float32).at[1, 0, 0, S - 1].set(0.0)

    fwd = jax.jit(encoder_forward)
    out = jax.block_until_ready(fwd(packed, tokens, mask))
    assert out.shape == (B, S, D_MODEL) and out.dtype == jnp.float32

    ref = jax.block_until_ready(_reference_forward(params, tokens, mask))
    assert jnp.allclose(out, ref, atol=3e-2, rtol=3e-2), (
        "Pallas/reference mismatch: max|diff|=%e"
        % float(jnp.max(jnp.abs(out - ref))))

    print("KERNEL_OK")
</pallas_src>

<mosaic_0001>
module attributes {stable_mosaic.version = 11 : i64} {
  func.func @_encoder_kernel(%arg0: memref<16x32xf32, #tpu.memory_space<vmem>>, %arg1: memref<8x16xf32, #tpu.memory_space<vmem>>, %arg2: memref<32x32xf32, #tpu.memory_space<vmem>>, %arg3: memref<8x32xf32, #tpu.memory_space<vmem>>, %arg4: memref<16x8xf32, #tpu.memory_space<vmem>>, %arg5: memref<2x32x32xbf16, #tpu.memory_space<vmem>>, %arg6: memref<2x32x32xbf16, #tpu.memory_space<vmem>>, %arg7: memref<2x1x32xf32, #tpu.memory_space<vmem>>, %arg8: memref<2x1x32xf32, #tpu.memory_space<vmem>>, %arg9: memref<2x64x32xbf16, #tpu.memory_space<vmem>>, %arg10: memref<2x1x64xf32, #tpu.memory_space<vmem>>, %arg11: memref<2x32x64xbf16, #tpu.memory_space<vmem>>, %arg12: memref<2x1x32xf32, #tpu.memory_space<vmem>>, %arg13: memref<2x1x32xf32, #tpu.memory_space<vmem>>, %arg14: memref<2x1x32xf32, #tpu.memory_space<vmem>>, %arg15: memref<16x32xf32, #tpu.memory_space<vmem>>) attributes {dimension_semantics = [], scalar_prefetch = 0 : i64, scratch_operands = 0 : i64, tpu.core_type = #tpu.core_type<tc>} {
    %c0 = arith.constant 0 : index
    %c0_0 = arith.constant 0 : index
    %0 = vector.load %arg0[%c0, %c0_0] : memref<16x32xf32, #tpu.memory_space<vmem>>, vector<16x32xf32>
    %c0_1 = arith.constant 0 : index
    %c0_2 = arith.constant 0 : index
    %1 = vector.load %arg1[%c0_1, %c0_2] : memref<8x16xf32, #tpu.memory_space<vmem>>, vector<8x16xf32>
    %c0_3 = arith.constant 0 : index
    %c0_4 = arith.constant 0 : index
    %2 = vector.load %arg2[%c0_3, %c0_4] : memref<32x32xf32, #tpu.memory_space<vmem>>, vector<32x32xf32>
    %c0_5 = arith.constant 0 : index
    %c0_6 = arith.constant 0 : index
    %3 = vector.load %arg3[%c0_5, %c0_6] : memref<8x32xf32, #tpu.memory_space<vmem>>, vector<8x32xf32>
    %c0_7 = arith.constant 0 : index
    %c0_8 = arith.constant 0 : index
    %4 = vector.load %arg4[%c0_7, %c0_8] : memref<16x8xf32, #tpu.memory_space<vmem>>, vector<16x8xf32>
    %5 = arith.truncf %0 : vector<16x32xf32> to vector<16x32xbf16>
    %c0_9 = arith.constant 0 : index
    %c0_10 = arith.constant 0 : index
    %c0_11 = arith.constant 0 : index
    %6 = vector.load %arg5[%c0_9, %c0_10, %c0_11] : memref<2x32x32xbf16, #tpu.memory_space<vmem>>, vector<1x32x32xbf16>
    %7 = vector.shape_cast %6 : vector<1x32x32xbf16> to vector<32x32xbf16>
    %cst = arith.constant dense<0.000000e+00> : vector<16x32xf32>
    %8 = tpu.matmul %5, %7, %cst {dimension_numbers = #tpu.dot_dimension_numbers<[1], [1], [0], [0], [0, 0, 1, 0], [], []>} : vector<16x32xbf16>, vector<32x32xbf16>, vector<16x32xf32> -> vector<16x32xf32>
    %cst_12 = arith.constant dense<0.000000e+00> : vector<8x32xf32>
    %9 = tpu.matmul %1, %8, %cst_12 {dimension_numbers = #tpu.dot_dimension_numbers<[1], [0], [0], [1], [0, 0, 1, 1], [], []>} : vector<8x16xf32>, vector<16x32xf32>, vector<8x32xf32> -> vector<8x32xf32>
    %cst_13 = arith.constant dense<0.000000e+00> : vector<8x32xf32>
    %10 = tpu.matmul %9, %2, %cst_13 {dimension_numbers = #tpu.dot_dimension_numbers<[1], [0], [0], [1], [0, 0, 1, 1], [], []>} : vector<8x32xf32>, vector<32x32xf32>, vector<8x32xf32> -> vector<8x32xf32>
    %11 = arith.mulf %10, %3 : vector<8x32xf32>
    %12 = arith.truncf %11 : vector<8x32xf32> to vector<8x32xbf16>
    %c0_14 = arith.constant 0 : index
    %c0_15 = arith.constant 0 : index
    %c0_16 = arith.constant 0 : index
    %13 = vector.load %arg6[%c0_14, %c0_15, %c0_16] : memref<2x32x32xbf16, #tpu.memory_space<vmem>>, vector<1x32x32xbf16>
    %14 = vector.shape_cast %13 : vector<1x32x32xbf16> to vector<32x32xbf16>
    %cst_17 = arith.constant dense<0.000000e+00> : vector<8x32xf32>
    %15 = tpu.matmul %12, %14, %cst_17 {dimension_numbers = #tpu.dot_dimension_numbers<[1], [1], [0], [0], [0, 0, 1, 0], [], []>} : vector<8x32xbf16>, vector<32x32xbf16>, vector<8x32xf32> -> vector<8x32xf32>
    %cst_18 = arith.constant dense<0.000000e+00> : vector<16x32xf32>
    %16 = tpu.matmul %4, %15, %cst_18 {dimension_numbers = #tpu.dot_dimension_numbers<[1], [0], [0], [1], [0, 0, 1, 1], [], []>} : vector<16x8xf32>, vector<8x32xf32>, vector<16x32xf32> -> vector<16x32xf32>
    %17 = arith.addf %0, %16 : vector<16x32xf32>
    %c0_19 = arith.constant 0 : index
    %c0_20 = arith.constant 0 : index
    %c0_21 = arith.constant 0 : index
    %18 = vector.load %arg7[%c0_19, %c0_20, %c0_21] : memref<2x1x32xf32, #tpu.memory_space<vmem>>, vector<1x1x32xf32>
    %19 = vector.shape_cast %18 : vector<1x1x32xf32> to vector<1x32xf32>
    %c0_22 = arith.constant 0 : index
    %c0_23 = arith.constant 0 : index
    %c0_24 = arith.constant 0 : index
    %20 = vector.load %arg8[%c0_22, %c0_23, %c0_24] : memref<2x1x32xf32, #tpu.memory_space<vmem>>, vector<1x1x32xf32>
    %21 = vector.shape_cast %20 : vector<1x1x32xf32> to vector<1x32xf32>
    %cst_25 = arith.constant dense<0.000000e+00> : vector<16xf32>
    %22 = vector.multi_reduction <add>, %17, %cst_25 [1] : vector<16x32xf32> to vector<16xf32>
    %23 = vector.shape_cast %22 : vector<16xf32> to vector<16x1xf32>
    %cst_26 = arith.constant 3.200000e+01 : f32
    %24 = vector.broadcast %cst_26 : f32 to vector<16x1xf32>
    %25 = arith.divf %23, %24 : vector<16x1xf32>
    %26 = vector.broadcast %25 : vector<16x1xf32> to vector<16x32xf32>
    %27 = arith.subf %17, %26 : vector<16x32xf32>
    %28 = arith.mulf %27, %27 : vector<16x32xf32>
    %cst_27 = arith.constant dense<0.000000e+00> : vector<16xf32>
    %29 = vector.multi_reduction <add>, %28, %cst_27 [1] : vector<16x32xf32> to vector<16xf32>
    %30 = vector.shape_cast %29 : vector<16xf32> to vector<16x1xf32>
    %cst_28 = arith.constant 3.200000e+01 : f32
    %31 = vector.broadcast %cst_28 : f32 to vector<16x1xf32>
    %32 = arith.divf %30, %31 : vector<16x1xf32>
    %33 = vector.broadcast %25 : vector<16x1xf32> to vector<16x32xf32>
    %34 = arith.subf %17, %33 : vector<16x32xf32>
    %cst_29 = arith.constant 9.99999974E-6 : f32
    %35 = vector.broadcast %cst_29 : f32 to vector<16x1xf32>
    %36 = arith.addf %32, %35 : vector<16x1xf32>
    %37 = math.rsqrt %36 : vector<16x1xf32>
    %38 = vector.broadcast %37 : vector<16x1xf32> to vector<16x32xf32>
    %39 = arith.mulf %34, %38 : vector<16x32xf32>
    %40 = vector.broadcast %19 : vector<1x32xf32> to vector<16x32xf32>
    %41 = arith.mulf %39, %40 : vector<16x32xf32>
    %42 = vector.broadcast %21 : vector<1x32xf32> to vector<16x32xf32>
    %43 = arith.addf %41, %42 : vector<16x32xf32>
    %44 = arith.truncf %43 : vector<16x32xf32> to vector<16x32xbf16>
    %c0_30 = arith.constant 0 : index
    %c0_31 = arith.constant 0 : index
    %c0_32 = arith.constant 0 : index
    %45 = vector.load %arg9[%c0_30, %c0_31, %c0_32] : memref<2x64x32xbf16, #tpu.memory_space<vmem>>, vector<1x64x32xbf16>
    %46 = vector.shape_cast %45 : vector<1x64x32xbf16> to vector<64x32xbf16>
    %cst_33 = arith.constant dense<0.000000e+00> : vector<16x64xf32>
    %47 = tpu.matmul %44, %46, %cst_33 {dimension_numbers = #tpu.dot_dimension_numbers<[1], [1], [0], [0], [0, 0, 1, 0], [], []>} : vector<16x32xbf16>, vector<64x32xbf16>, vector<16x64xf32> -> vector<16x64xf32>
    %c0_34 = arith.constant 0 : index
    %c0_35 = arith.constant 0 : index
    %c0_36 = arith.constant 0 : index
    %48 = vector.load %arg10[%c0_34, %c0_35, %c0_36] : memref<2x1x64xf32, #tpu.memory_space<vmem>>, vector<1x1x64xf32>
    %49 = vector.shape_cast %48 : vector<1x1x64xf32> to vector<1x64xf32>
    %50 = vector.broadcast %49 : vector<1x64xf32> to vector<16x64xf32>
    %51 = arith.addf %47, %50 : vector<16x64xf32>
    %cst_37 = arith.constant 0.000000e+00 : f32
    %52 = vector.broadcast %cst_37 : f32 to vector<16x64xf32>
    %53 = arith.maximumf %51, %52 : vector<16x64xf32>
    %54 = arith.truncf %53 : vector<16x64xf32> to vector<16x64xbf16>
    %c0_38 = arith.constant 0 : index
    %c0_39 = arith.constant 0 : index
    %c0_40 = arith.constant 0 : index
    %55 = vector.load %arg11[%c0_38, %c0_39, %c0_40] : memref<2x32x64xbf16, #tpu.memory_space<vmem>>, vector<1x32x64xbf16>
    %56 = vector.shape_cast %55 : vector<1x32x64xbf16> to vector<32x64xbf16>
    %cst_41 = arith.constant dense<0.000000e+00> : vector<16x32xf32>
    %57 = tpu.matmul %54, %56, %cst_41 {dimension_numbers = #tpu.dot_dimension_numbers<[1], [1], [0], [0], [0, 0, 1, 0], [], []>} : vector<16x64xbf16>, vector<32x64xbf16>, vector<16x32xf32> -> vector<16x32xf32>
    %c0_42 = arith.constant 0 : index
    %c0_43 = arith.constant 0 : index
    %c0_44 = arith.constant 0 : index
    %58 = vector.load %arg12[%c0_42, %c0_43, %c0_44] : memref<2x1x32xf32, #tpu.memory_space<vmem>>, vector<1x1x32xf32>
    %59 = vector.shape_cast %58 : vector<1x1x32xf32> to vector<1x32xf32>
    %60 = vector.broadcast %59 : vector<1x32xf32> to vector<16x32xf32>
    %61 = arith.addf %57, %60 : vector<16x32xf32>
    %62 = arith.addf %61, %43 : vector<16x32xf32>
    %c0_45 = arith.constant 0 : index
    %c0_46 = arith.constant 0 : index
    %c0_47 = arith.constant 0 : index
    %63 = vector.load %arg13[%c0_45, %c0_46, %c0_47] : memref<2x1x32xf32, #tpu.memory_space<vmem>>, vector<1x1x32xf32>
    %64 = vector.shape_cast %63 : vector<1x1x32xf32> to vector<1x32xf32>
    %c0_48 = arith.constant 0 : index
    %c0_49 = arith.constant 0 : index
    %c0_50 = arith.constant 0 : index
    %65 = vector.load %arg14[%c0_48, %c0_49, %c0_50] : memref<2x1x32xf32, #tpu.memory_space<vmem>>, vector<1x1x32xf32>
    %66 = vector.shape_cast %65 : vector<1x1x32xf32> to vector<1x32xf32>
    %cst_51 = arith.constant dense<0.000000e+00> : vector<16xf32>
    %67 = vector.multi_reduction <add>, %62, %cst_51 [1] : vector<16x32xf32> to vector<16xf32>
    %68 = vector.shape_cast %67 : vector<16xf32> to vector<16x1xf32>
    %cst_52 = arith.constant 3.200000e+01 : f32
    %69 = vector.broadcast %cst_52 : f32 to vector<16x1xf32>
    %70 = arith.divf %68, %69 : vector<16x1xf32>
    %71 = vector.broadcast %70 : vector<16x1xf32> to vector<16x32xf32>
    %72 = arith.subf %62, %71 : vector<16x32xf32>
    %73 = arith.mulf %72, %72 : vector<16x32xf32>
    %cst_53 = arith.constant dense<0.000000e+00> : vector<16xf32>
    %74 = vector.multi_reduction <add>, %73, %cst_53 [1] : vector<16x32xf32> to vector<16xf32>
    %75 = vector.shape_cast %74 : vector<16xf32> to vector<16x1xf32>
    %cst_54 = arith.constant 3.200000e+01 : f32
    %76 = vector.broadcast %cst_54 : f32 to vector<16x1xf32>
    %77 = arith.divf %75, %76 : vector<16x1xf32>
    %78 = vector.broadcast %70 : vector<16x1xf32> to vector<16x32xf32>
    %79 = arith.subf %62, %78 : vector<16x32xf32>
    %cst_55 = arith.constant 9.99999974E-6 : f32
    %80 = vector.broadcast %cst_55 : f32 to vector<16x1xf32>
    %81 = arith.addf %77, %80 : vector<16x1xf32>
    %82 = math.rsqrt %81 : vector<16x1xf32>
    %83 = vector.broadcast %82 : vector<16x1xf32> to vector<16x32xf32>
    %84 = arith.mulf %79, %83 : vector<16x32xf32>
    %85 = vector.broadcast %64 : vector<1x32xf32> to vector<16x32xf32>
    %86 = arith.mulf %84, %85 : vector<16x32xf32>
    %87 = vector.broadcast %66 : vector<1x32xf32> to vector<16x32xf32>
    %88 = arith.addf %86, %87 : vector<16x32xf32>
    %89 = arith.truncf %88 : vector<16x32xf32> to vector<16x32xbf16>
    %c1 = arith.constant 1 : index
    %c0_56 = arith.constant 0 : index
    %c0_57 = arith.constant 0 : index
    %90 = vector.load %arg5[%c1, %c0_56, %c0_57] : memref<2x32x32xbf16, #tpu.memory_space<vmem>>, vector<1x32x32xbf16>
    %91 = vector.shape_cast %90 : vector<1x32x32xbf16> to vector<32x32xbf16>
    %cst_58 = arith.constant dense<0.000000e+00> : vector<16x32xf32>
    %92 = tpu.matmul %89, %91, %cst_58 {dimension_numbers = #tpu.dot_dimension_numbers<[1], [1], [0], [0], [0, 0, 1, 0], [], []>} : vector<16x32xbf16>, vector<32x32xbf16>, vector<16x32xf32> -> vector<16x32xf32>
    %cst_59 = arith.constant dense<0.000000e+00> : vector<8x32xf32>
    %93 = tpu.matmul %1, %92, %cst_59 {dimension_numbers = #tpu.dot_dimension_numbers<[1], [0], [0], [1], [0, 0, 1, 1], [], []>} : vector<8x16xf32>, vector<16x32xf32>, vector<8x32xf32> -> vector<8x32xf32>
    %cst_60 = arith.constant dense<0.000000e+00> : vector<8x32xf32>
    %94 = tpu.matmul %93, %2, %cst_60 {dimension_numbers = #tpu.dot_dimension_numbers<[1], [0], [0], [1], [0, 0, 1, 1], [], []>} : vector<8x32xf32>, vector<32x32xf32>, vector<8x32xf32> -> vector<8x32xf32>
    %95 = arith.mulf %94, %3 : vector<8x32xf32>
    %96 = arith.truncf %95 : vector<8x32xf32> to vector<8x32xbf16>
    %c1_61 = arith.constant 1 : index
    %c0_62 = arith.constant 0 : index
    %c0_63 = arith.constant 0 : index
    %97 = vector.load %arg6[%c1_61, %c0_62, %c0_63] : memref<2x32x32xbf16, #tpu.memory_space<vmem>>, vector<1x32x32xbf16>
    %98 = vector.shape_cast %97 : vector<1x32x32xbf16> to vector<32x32xbf16>
    %cst_64 = arith.constant dense<0.000000e+00> : vector<8x32xf32>
    %99 = tpu.matmul %96, %98, %cst_64 {dimension_numbers = #tpu.dot_dimension_numbers<[1], [1], [0], [0], [0, 0, 1, 0], [], []>} : vector<8x32xbf16>, vector<32x32xbf16>, vector<8x32xf32> -> vector<8x32xf32>
    %cst_65 = arith.constant dense<0.000000e+00> : vector<16x32xf32>
    %100 = tpu.matmul %4, %99, %cst_65 {dimension_numbers = #tpu.dot_dimension_numbers<[1], [0], [0], [1], [0, 0, 1, 1], [], []>} : vector<16x8xf32>, vector<8x32xf32>, vector<16x32xf32> -> vector<16x32xf32>
    %101 = arith.addf %88, %100 : vector<16x32xf32>
    %c1_66 = arith.constant 1 : index
    %c0_67 = arith.constant 0 : index
    %c0_68 = arith.constant 0 : index
    %102 = vector.load %arg7[%c1_66, %c0_67, %c0_68] : memref<2x1x32xf32, #tpu.memory_space<vmem>>, vector<1x1x32xf32>
    %103 = vector.shape_cast %102 : vector<1x1x32xf32> to vector<1x32xf32>
    %c1_69 = arith.constant 1 : index
    %c0_70 = arith.constant 0 : index
    %c0_71 = arith.constant 0 : index
    %104 = vector.load %arg8[%c1_69, %c0_70, %c0_71] : memref<2x1x32xf32, #tpu.memory_space<vmem>>, vector<1x1x32xf32>
    %105 = vector.shape_cast %104 : vector<1x1x32xf32> to vector<1x32xf32>
    %cst_72 = arith.constant dense<0.000000e+00> : vector<16xf32>
    %106 = vector.multi_reduction <add>, %101, %cst_72 [1] : vector<16x32xf32> to vector<16xf32>
    %107 = vector.shape_cast %106 : vector<16xf32> to vector<16x1xf32>
    %cst_73 = arith.constant 3.200000e+01 : f32
    %108 = vector.broadcast %cst_73 : f32 to vector<16x1xf32>
    %109 = arith.divf %107, %108 : vector<16x1xf32>
    %110 = vector.broadcast %109 : vector<16x1xf32> to vector<16x32xf32>
    %111 = arith.subf %101, %110 : vector<16x32xf32>
    %112 = arith.mulf %111, %111 : vector<16x32xf32>
    %cst_74 = arith.constant dense<0.000000e+00> : vector<16xf32>
    %113 = vector.multi_reduction <add>, %112, %cst_74 [1] : vector<16x32xf32> to vector<16xf32>
    %114 = vector.shape_cast %113 : vector<16xf32> to vector<16x1xf32>
    %cst_75 = arith.constant 3.200000e+01 : f32
    %115 = vector.broadcast %cst_75 : f32 to vector<16x1xf32>
    %116 = arith.divf %114, %115 : vector<16x1xf32>
    %117 = vector.broadcast %109 : vector<16x1xf32> to vector<16x32xf32>
    %118 = arith.subf %101, %117 : vector<16x32xf32>
    %cst_76 = arith.constant 9.99999974E-6 : f32
    %119 = vector.broadcast %cst_76 : f32 to vector<16x1xf32>
    %120 = arith.addf %116, %119 : vector<16x1xf32>
    %121 = math.rsqrt %120 : vector<16x1xf32>
    %122 = vector.broadcast %121 : vector<16x1xf32> to vector<16x32xf32>
    %123 = arith.mulf %118, %122 : vector<16x32xf32>
    %124 = vector.broadcast %103 : vector<1x32xf32> to vector<16x32xf32>
    %125 = arith.mulf %123, %124 : vector<16x32xf32>
    %126 = vector.broadcast %105 : vector<1x32xf32> to vector<16x32xf32>
    %127 = arith.addf %125, %126 : vector<16x32xf32>
    %128 = arith.truncf %127 : vector<16x32xf32> to vector<16x32xbf16>
    %c1_77 = arith.constant 1 : index
    %c0_78 = arith.constant 0 : index
    %c0_79 = arith.constant 0 : index
    %129 = vector.load %arg9[%c1_77, %c0_78, %c0_79] : memref<2x64x32xbf16, #tpu.memory_space<vmem>>, vector<1x64x32xbf16>
    %130 = vector.shape_cast %129 : vector<1x64x32xbf16> to vector<64x32xbf16>
    %cst_80 = arith.constant dense<0.000000e+00> : vector<16x64xf32>
    %131 = tpu.matmul %128, %130, %cst_80 {dimension_numbers = #tpu.dot_dimension_numbers<[1], [1], [0], [0], [0, 0, 1, 0], [], []>} : vector<16x32xbf16>, vector<64x32xbf16>, vector<16x64xf32> -> vector<16x64xf32>
    %c1_81 = arith.constant 1 : index
    %c0_82 = arith.constant 0 : index
    %c0_83 = arith.constant 0 : index
    %132 = vector.load %arg10[%c1_81, %c0_82, %c0_83] : memref<2x1x64xf32, #tpu.memory_space<vmem>>, vector<1x1x64xf32>
    %133 = vector.shape_cast %132 : vector<1x1x64xf32> to vector<1x64xf32>
    %134 = vector.broadcast %133 : vector<1x64xf32> to vector<16x64xf32>
    %135 = arith.addf %131, %134 : vector<16x64xf32>
    %cst_84 = arith.constant 0.000000e+00 : f32
    %136 = vector.broadcast %cst_84 : f32 to vector<16x64xf32>
    %137 = arith.maximumf %135, %136 : vector<16x64xf32>
    %138 = arith.truncf %137 : vector<16x64xf32> to vector<16x64xbf16>
    %c1_85 = arith.constant 1 : index
    %c0_86 = arith.constant 0 : index
    %c0_87 = arith.constant 0 : index
    %139 = vector.load %arg11[%c1_85, %c0_86, %c0_87] : memref<2x32x64xbf16, #tpu.memory_space<vmem>>, vector<1x32x64xbf16>
    %140 = vector.shape_cast %139 : vector<1x32x64xbf16> to vector<32x64xbf16>
    %cst_88 = arith.constant dense<0.000000e+00> : vector<16x32xf32>
    %141 = tpu.matmul %138, %140, %cst_88 {dimension_numbers = #tpu.dot_dimension_numbers<[1], [1], [0], [0], [0, 0, 1, 0], [], []>} : vector<16x64xbf16>, vector<32x64xbf16>, vector<16x32xf32> -> vector<16x32xf32>
    %c1_89 = arith.constant 1 : index
    %c0_90 = arith.constant 0 : index
    %c0_91 = arith.constant 0 : index
    %142 = vector.load %arg12[%c1_89, %c0_90, %c0_91] : memref<2x1x32xf32, #tpu.memory_space<vmem>>, vector<1x1x32xf32>
    %143 = vector.shape_cast %142 : vector<1x1x32xf32> to vector<1x32xf32>
    %144 = vector.broadcast %143 : vector<1x32xf32> to vector<16x32xf32>
    %145 = arith.addf %141, %144 : vector<16x32xf32>
    %146 = arith.addf %145, %127 : vector<16x32xf32>
    %c1_92 = arith.constant 1 : index
    %c0_93 = arith.constant 0 : index
    %c0_94 = arith.constant 0 : index
    %147 = vector.load %arg13[%c1_92, %c0_93, %c0_94] : memref<2x1x32xf32, #tpu.memory_space<vmem>>, vector<1x1x32xf32>
    %148 = vector.shape_cast %147 : vector<1x1x32xf32> to vector<1x32xf32>
    %c1_95 = arith.constant 1 : index
    %c0_96 = arith.constant 0 : index
    %c0_97 = arith.constant 0 : index
    %149 = vector.load %arg14[%c1_95, %c0_96, %c0_97] : memref<2x1x32xf32, #tpu.memory_space<vmem>>, vector<1x1x32xf32>
    %150 = vector.shape_cast %149 : vector<1x1x32xf32> to vector<1x32xf32>
    %cst_98 = arith.constant dense<0.000000e+00> : vector<16xf32>
    %151 = vector.multi_reduction <add>, %146, %cst_98 [1] : vector<16x32xf32> to vector<16xf32>
    %152 = vector.shape_cast %151 : vector<16xf32> to vector<16x1xf32>
    %cst_99 = arith.constant 3.200000e+01 : f32
    %153 = vector.broadcast %cst_99 : f32 to vector<16x1xf32>
    %154 = arith.divf %152, %153 : vector<16x1xf32>
    %155 = vector.broadcast %154 : vector<16x1xf32> to vector<16x32xf32>
    %156 = arith.subf %146, %155 : vector<16x32xf32>
    %157 = arith.mulf %156, %156 : vector<16x32xf32>
    %cst_100 = arith.constant dense<0.000000e+00> : vector<16xf32>
    %158 = vector.multi_reduction <add>, %157, %cst_100 [1] : vector<16x32xf32> to vector<16xf32>
    %159 = vector.shape_cast %158 : vector<16xf32> to vector<16x1xf32>
    %cst_101 = arith.constant 3.200000e+01 : f32
    %160 = vector.broadcast %cst_101 : f32 to vector<16x1xf32>
    %161 = arith.divf %159, %160 : vector<16x1xf32>
    %162 = vector.broadcast %154 : vector<16x1xf32> to vector<16x32xf32>
    %163 = arith.subf %146, %162 : vector<16x32xf32>
    %cst_102 = arith.constant 9.99999974E-6 : f32
    %164 = vector.broadcast %cst_102 : f32 to vector<16x1xf32>
    %165 = arith.addf %161, %164 : vector<16x1xf32>
    %166 = math.rsqrt %165 : vector<16x1xf32>
    %167 = vector.broadcast %166 : vector<16x1xf32> to vector<16x32xf32>
    %168 = arith.mulf %163, %167 : vector<16x32xf32>
    %169 = vector.broadcast %148 : vector<1x32xf32> to vector<16x32xf32>
    %170 = arith.mulf %168, %169 : vector<16x32xf32>
    %171 = vector.broadcast %150 : vector<1x32xf32> to vector<16x32xf32>
    %172 = arith.addf %170, %171 : vector<16x32xf32>
    %c0_103 = arith.constant 0 : index
    %c0_104 = arith.constant 0 : index
    %173 = vector.load %arg15[%c0_103, %c0_104] : memref<16x32xf32, #tpu.memory_space<vmem>>, vector<16x32xf32>
    tpu.vector_store %arg15[%c0_103, %c0_104], %172 {strides = array<i32>} : memref<16x32xf32, #tpu.memory_space<vmem>>, vector<16x32xf32>,
    return
  }
}

</mosaic_0001>

<llo_original>
// kernel: encoder_forward.1
$region0: #{encoder_forward.1}
  #allocation0 [shape = 'u32[]', space=smem, size = 0x4, offset = 0x4, fixed_abs, tag = 'smem constant byte address 0x4 - core index']
  #allocation1 [shape = 'u32[144,128]{1,0:T(1,128)}', space=vmem, size = 0x12000, scoped, tag = 'internal scratch']
  %s0 = inlined_call_operand.vmem [shape: f32[16,32], index: 0, kind: input, shape index: {}]
  %s1 = inlined_call_operand.vmem [shape: f32[8,16], index: 1, kind: input, shape index: {}]
  %s2 = inlined_call_operand.vmem [shape: f32[32,32], index: 2, kind: input, shape index: {}]
  %s3 = inlined_call_operand.vmem [shape: f32[8,32], index: 3, kind: input, shape index: {}]
  %s4 = inlined_call_operand.vmem [shape: f32[16,8], index: 4, kind: input, shape index: {}]
  %s5 = inlined_call_operand.vmem [shape: bf16[2,32,32], index: 5, kind: input, shape index: {}]
  %s6 = inlined_call_operand.vmem [shape: bf16[2,32,32], index: 6, kind: input, shape index: {}]
  %s7 = inlined_call_operand.vmem [shape: f32[2,1,32], index: 7, kind: input, shape index: {}]
  %s8 = inlined_call_operand.vmem [shape: f32[2,1,32], index: 8, kind: input, shape index: {}]
  %s9 = inlined_call_operand.vmem [shape: bf16[2,64,32], index: 9, kind: input, shape index: {}]
  %s10 = inlined_call_operand.vmem [shape: f32[2,1,64], index: 10, kind: input, shape index: {}]
  %s11 = inlined_call_operand.vmem [shape: bf16[2,32,64], index: 11, kind: input, shape index: {}]
  %s12 = inlined_call_operand.vmem [shape: f32[2,1,32], index: 12, kind: input, shape index: {}]
  %s13 = inlined_call_operand.vmem [shape: f32[2,1,32], index: 13, kind: input, shape index: {}]
  %s14 = inlined_call_operand.vmem [shape: f32[2,1,32], index: 14, kind: input, shape index: {}]
  %s15 = inlined_call_operand.hbm [shape: f32[16,32], index: 15, kind: output, shape index: {}]
  %s16 = sld [smem:[#allocation0]]
  $region70: #{encoder_forward.1} parent=0
    _
  %s18 = ssub.s32 1, %s16
  %s19 = scalar_select 0, %s18, %s16
  $region1: #{encoder_forward.1} parent=0
    #allocation2 [shape = 'u8[8192]{0}', space=vmem, size = 0x2000, scoped, tag = 'output window, operand 0, single buffered']
    #allocation3 [shape = 's32[1]{0}', space=sflag, size = 0x4, scoped, tag = 'scoped memory for encoder_forward.1']
    %20 = vsyncpa [#allocation3], 0
    // Predicated region
    $region2: #{encoder_forward.1} parent=1 // pred_check
      _
    $region3: #{encoder_forward.1} parent=1 // pred_check_branch
      %22 = sbr.rel (0) target = $region5
    $region4: #{encoder_forward.1} parent=1 // pred_region
      _
    $region5: #{encoder_forward.1} parent=1 // pred_fallthru
      _
    // Predicated region
    $region6: #{encoder_forward.1} parent=1 // pred_check
      _
    $region7: #{encoder_forward.1} parent=1 // pred_check_branch
      %24 = sbr.rel (0) target = $region9
    $region8: #{encoder_forward.1} parent=1 // pred_region
      _
    $region9: #{encoder_forward.1} parent=1 // pred_fallthru
      _
    // Predicated region
    $region10: #{encoder_forward.1} parent=1 // pred_check
      _
    $region11: #{encoder_forward.1} parent=1 // pred_check_branch
      %26 = sbr.rel (0) target = $region13
    $region12: #{encoder_forward.1} parent=1 // pred_region
      _
    $region13: #{encoder_forward.1} parent=1 // pred_fallthru
      _
    // Predicated region
    $region14: #{encoder_forward.1} parent=1 // pred_check
      _
    $region15: #{encoder_forward.1} parent=1 // pred_check_branch
      %28 = sbr.rel (0) target = $region17
    $region16: #{encoder_forward.1} parent=1 // pred_region
      _
    $region17: #{encoder_forward.1} parent=1 // pred_fallthru
      _
    // Predicated region
    $region18: #{encoder_forward.1} parent=1 // pred_check
      _
    $region19: #{encoder_forward.1} parent=1 // pred_check_branch
      %30 = sbr.rel (0) target = $region21
    $region20: #{encoder_forward.1} parent=1 // pred_region
      _
    $region21: #{encoder_forward.1} parent=1 // pred_fallthru
      _
    // Predicated region
    $region22: #{encoder_forward.1} parent=1 // pred_check
      _
    $region23: #{encoder_forward.1} parent=1 // pred_check_branch
      %32 = sbr.rel (0) target = $region25
    $region24: #{encoder_forward.1} parent=1 // pred_region
      _
    $region25: #{encoder_forward.1} parent=1 // pred_fallthru
      _
    // Predicated region
    $region26: #{encoder_forward.1} parent=1 // pred_check
      _
    $region27: #{encoder_forward.1} parent=1 // pred_check_branch
      %34 = sbr.rel (0) target = $region29
    $region28: #{encoder_forward.1} parent=1 // pred_region
      _
    $region29: #{encoder_forward.1} parent=1 // pred_fallthru
      _
    // Predicated region
    $region30: #{encoder_forward.1} parent=1 // pred_check
      _
    $region31: #{encoder_forward.1} parent=1 // pred_check_branch
      %36 = sbr.rel (0) target = $region33
    $region32: #{encoder_forward.1} parent=1 // pred_region
      _
    $region33: #{encoder_forward.1} parent=1 // pred_fallthru
      _
    // Predicated region
    $region34: #{encoder_forward.1} parent=1 // pred_check
      _
    $region35: #{encoder_forward.1} parent=1 // pred_check_branch
      %38 = sbr.rel (0) target = $region37
    $region36: #{encoder_forward.1} parent=1 // pred_region
      _
    $region37: #{encoder_forward.1} parent=1 // pred_fallthru
      _
    // Predicated region
    $region38: #{encoder_forward.1} parent=1 // pred_check
      _
    $region39: #{encoder_forward.1} parent=1 // pred_check_branch
      %40 = sbr.rel (0) target = $region41
    $region40: #{encoder_forward.1} parent=1 // pred_region
      _
    $region41: #{encoder_forward.1} parent=1 // pred_fallthru
      _
    // Predicated region
    $region42: #{encoder_forward.1} parent=1 // pred_check
      _
    $region43: #{encoder_forward.1} parent=1 // pred_check_branch
      %42 = sbr.rel (0) target = $region45
    $region44: #{encoder_forward.1} parent=1 // pred_region
      _
    $region45: #{encoder_forward.1} parent=1 // pred_fallthru
      _
    // Predicated region
    $region46: #{encoder_forward.1} parent=1 // pred_check
      _
    $region47: #{encoder_forward.1} parent=1 // pred_check_branch
      %44 = sbr.rel (0) target = $region49
    $region48: #{encoder_forward.1} parent=1 // pred_region
      _
    $region49: #{encoder_forward.1} parent=1 // pred_fallthru
      _
    // Predicated region
    $region50: #{encoder_forward.1} parent=1 // pred_check
      _
    $region51: #{encoder_forward.1} parent=1 // pred_check_branch
      %46 = sbr.rel (0) target = $region53
    $region52: #{encoder_forward.1} parent=1 // pred_region
      _
    $region53: #{encoder_forward.1} parent=1 // pred_fallthru
      _
    // Predicated region
    $region54: #{encoder_forward.1} parent=1 // pred_check
      _
    $region55: #{encoder_forward.1} parent=1 // pred_check_branch
      %48 = sbr.rel (0) target = $region57
    $region56: #{encoder_forward.1} parent=1 // pred_region
      _
    $region57: #{encoder_forward.1} parent=1 // pred_fallthru
      _
    // Predicated region
    $region58: #{encoder_forward.1} parent=1 // pred_check
      _
    $region59: #{encoder_forward.1} parent=1 // pred_check_branch
      %50 = sbr.rel (0) target = $region61
    $region60: #{encoder_forward.1} parent=1 // pred_region
      _
    $region61: #{encoder_forward.1} parent=1 // pred_fallthru
      _
    %v52 = vld [vmem:[%s0] sm:$0xff]
    %v53 = vld [vmem:[%s0 + $0x8] sm:$0xff]
    %v54 = vld [vmem:[%s1] sm:$0xff]
    %v55 = vld [vmem:[%s2] sm:$0xff]
    %v56 = vld [vmem:[%s2 + $0x8] sm:$0xff]
    %v57 = vld [vmem:[%s2 + $0x10] sm:$0xff]
    %v58 = vld [vmem:[%s2 + $0x18] sm:$0xff]
    %v59 = vld [vmem:[%s3] sm:$0xff]
    %v60 = vld [vmem:[%s4] sm:$0xff]
    %v61 = vld [vmem:[%s4 + $0x8] sm:$0xff]
    %v62 = vpack.c.bf16 %v53, %v52
    %v63 = vld [vmem:[%s5] sm:$0xf]
    %v64 = vld [vmem:[%s5 + $0x4] sm:$0xf]
    %v65 = vld [vmem:[%s5 + $0x8] sm:$0xf]
    %v66 = vld [vmem:[%s5 + $0xc] sm:$0xf]
    %v71 = vunpack.c.l.b16 %v63
    %v72 = vunpack.c.l.b16 %v64
    %v73 = vunpack.c.l.b16 %v65
    %v74 = vunpack.c.l.b16 %v66
    %v75 = vpack.c.b16 %v72, %v71
    %v76 = vpack.c.b16 %v74, %v73
    %vm77 = vcmask 261120
    %v79 = vsel %vm77, %v62, 0
    %v82 = vsel %vm77, %v75, 0
    %v85 = vsel %vm77, %v76, 0
    %87 = vmatprep.subr.bf16.mxu0 0
    %88 = vmatpush1.bf16.xpose.msra.mxu0 0
    %89 = vmatprep.subr.bf16.mxu0 0
    %90 = vmatpush1.bf16.xpose.msra.mxu0 0
    %91 = vmatprep.subr.bf16.mxu0 0
    %92 = vmatpush1.bf16.xpose.msra.mxu0 0
    %93 = vmatprep.subr.bf16.mxu0 0
    %94 = vmatpush1.bf16.xpose.msra.mxu0 0
    %95 = vmatprep.subr.bf16.mxu0 0
    %96 = vmatpush1.bf16.xpose.msra.mxu0 0
    %97 = vmatprep.subr.bf16.mxu0 0
    %98 = vmatpush1.bf16.xpose.msra.mxu0 0
    %99 = vmatprep.subr.bf16.mxu0 0
    %100 = vmatpush1.bf16.xpose.msra.mxu0 %v85
    %101 = vmatprep.subr.bf16.mxu0 0
    %102 = vmatpush1.bf16.xpose.msra.mxu0 %v82
    %103 = vmatprep.subr.bf16.mxu0 0
    %104 = vmatpush2.bf16.xpose.msra.mxu0 0
    %105 = vmatprep.subr.bf16.mxu0 0
    %106 = vmatpush2.bf16.xpose.msra.mxu0 0
    %107 = vmatprep.subr.bf16.mxu0 0
    %108 = vmatpush2.bf16.xpose.msra.mxu0 0
    %109 = vmatprep.subr.bf16.mxu0 0
    %110 = vmatpush2.bf16.xpose.msra.mxu0 0
    %111 = vmatprep.subr.bf16.mxu0 0
    %112 = vmatpush2.bf16.xpose.msra.mxu0 0
    %113 = vmatprep.subr.bf16.mxu0 0
    %114 = vmatpush2.bf16.xpose.msra.mxu0 0
    %115 = vmatprep.subr.bf16.mxu0 0
    %116 = vmatpush2.bf16.xpose.msra.mxu0 0
    %117 = vmatprep.subr.bf16.mxu0 0
    %118 = vmatpush2.bf16.xpose.msra.mxu0 0
    %119 = vmatprep.mubr.bf16.mxu0 0
    %120 = vmatmul.mubr.bf16.gmra.mxu0 %v79
    %v121 = vpop.f32.mrf.mxu0
    %v122 = vadd.f32 0.0, %v121
    %v123 = vpop.f32.mrf.mxu0
    %v124 = vpop.f32.mrf.mxu0
    %v125 = vadd.f32 0.0, %v124
    %v126 = vpop.f32.mrf.mxu0
    %127 = vdwg.mxu0
    %vm128 = vcmask 130048
    %v130 = vsel %vm128, %v54, 0
    %132 = vmatprep.subr.mxu0 0.0
    %133 = vmatpush1.msra.mxu0 0.0
    %134 = vmatprep.subr.mxu0 0.0
    %135 = vmatpush1.msra.mxu0 0.0
    %136 = vmatprep.subr.mxu0 0.0
    %137 = vmatpush1.msra.mxu0 0.0
    %138 = vmatprep.subr.mxu0 0.0
    %139 = vmatpush1.msra.mxu0 0.0
    %140 = vmatprep.subr.mxu0 0.0
    %141 = vmatpush1.msra.mxu0 0.0
    %142 = vmatprep.subr.mxu0 0.0
    %143 = vmatpush1.msra.mxu0 0.0
    %144 = vmatprep.subr.mxu0 0.0
    %145 = vmatpush1.msra.mxu0 0.0
    %146 = vmatprep.subr.mxu0 0.0
    %147 = vmatpush1.msra.mxu0 0.0
    %148 = vmatprep.subr.mxu0 0.0
    %149 = vmatpush1.msra.mxu0 0.0
    %150 = vmatprep.subr.mxu0 0.0
    %151 = vmatpush1.msra.mxu0 0.0
    %152 = vmatprep.subr.mxu0 0.0
    %153 = vmatpush1.msra.mxu0 0.0
    %154 = vmatprep.subr.mxu0 0.0
    %155 = vmatpush1.msra.mxu0 0.0
    %156 = vmatprep.subr.mxu0 0.0
    %157 = vmatpush1.msra.mxu0 0.0
    %158 = vmatprep.subr.mxu0 0.0
    %159 = vmatpush1.msra.mxu0 0.0
    %160 = vmatprep.subr.mxu0 0.0
    %161 = vmatpush1.msra.mxu0 %v125
    %162 = vmatprep.subr.mxu0 0.0
    %163 = vmatpush1.msra.mxu0 %v122
    %164 = vmatprep.subr.mxu0 0.0
    %165 = vmatpush2.msra.mxu0 0.0
    %166 = vmatprep.subr.mxu0 0.0
    %167 = vmatpush2.msra.mxu0 0.0
    %168 = vmatprep.subr.mxu0 0.0
    %169 = vmatpush2.msra.mxu0 0.0
    %170 = vmatprep.subr.mxu0 0.0
    %171 = vmatpush2.msra.mxu0 0.0
    %172 = vmatprep.subr.mxu0 0.0
    %173 = vmatpush2.msra.mxu0 0.0
    %174 = vmatprep.subr.mxu0 0.0
    %175 = vmatpush2.msra.mxu0 0.0
    %176 = vmatprep.subr.mxu0 0.0
    %177 = vmatpush2.msra.mxu0 0.0
    %178 = vmatprep.subr.mxu0 0.0
    %179 = vmatpush2.msra.mxu0 0.0
    %180 = vmatprep.subr.mxu0 0.0
    %181 = vmatpush2.msra.mxu0 0.0
    %182 = vmatprep.subr.mxu0 0.0
    %183 = vmatpush2.msra.mxu0 0.0
    %184 = vmatprep.subr.mxu0 0.0
    %185 = vmatpush2.msra.mxu0 0.0
    %186 = vmatprep.subr.mxu0 0.0
    %187 = vmatpush2.msra.mxu0 0.0
    %188 = vmatprep.subr.mxu0 0.0
    %189 = vmatpush2.msra.mxu0 0.0
    %190 = vmatprep.subr.mxu0 0.0
    %191 = vmatpush2.msra.mxu0 0.0
    %192 = vmatprep.subr.mxu0 0.0
    %193 = vmatpush2.msra.mxu0 0.0
    %194 = vmatprep.subr.mxu0 0.0
    %195 = vmatpush2.msra.mxu0 0.0
    %196 = vmatprep.mubr.f32.mxu0 0.0
    %197 = vmatmul.mubr.f32.gmra.mxu0 %v130
    %v198 = vpop.f32.mrf.mxu0
    %v199 = vadd.f32 0.0, %v198
    %v200 = vpop.f32.mrf.mxu0
    %201 = vdwg.mxu0
    %v203 = vsel %vm77, %v199, 0
    %205 = vmatprep.subr.mxu0 0.0
    %206 = vmatpush1.msra.mxu0 0.0
    %207 = vmatprep.subr.mxu0 0.0
    %208 = vmatpush1.msra.mxu0 0.0
    %209 = vmatprep.subr.mxu0 0.0
    %210 = vmatpush1.msra.mxu0 0.0
    %211 = vmatprep.subr.mxu0 0.0
    %212 = vmatpush1.msra.mxu0 0.0
    %213 = vmatprep.subr.mxu0 0.0
    %214 = vmatpush1.msra.mxu0 0.0
    %215 = vmatprep.subr.mxu0 0.0
    %216 = vmatpush1.msra.mxu0 0.0
    %217 = vmatprep.subr.mxu0 0.0
    %218 = vmatpush1.msra.mxu0 0.0
    %219 = vmatprep.subr.mxu0 0.0
    %220 = vmatpush1.msra.mxu0 0.0
    %221 = vmatprep.subr.mxu0 0.0
    %222 = vmatpush1.msra.mxu0 0.0
    %223 = vmatprep.subr.mxu0 0.0
    %224 = vmatpush1.msra.mxu0 0.0
    %225 = vmatprep.subr.mxu0 0.0
    %226 = vmatpush1.msra.mxu0 0.0
    %227 = vmatprep.subr.mxu0 0.0
    %228 = vmatpush1.msra.mxu0 0.0
    %229 = vmatprep.subr.mxu0 0.0
    %230 = vmatpush1.msra.mxu0 %v58
    %231 = vmatprep.subr.mxu0 0.0
    %232 = vmatpush1.msra.mxu0 %v57
    %233 = vmatprep.subr.mxu0 0.0
    %234 = vmatpush1.msra.mxu0 %v56
    %235 = vmatprep.subr.mxu0 0.0
    %236 = vmatpush1.msra.mxu0 %v55
    %237 = vmatprep.subr.mxu0 0.0
    %238 = vmatpush2.msra.mxu0 0.0
    %239 = vmatprep.subr.mxu0 0.0
    %240 = vmatpush2.msra.mxu0 0.0
    %241 = vmatprep.subr.mxu0 0.0
    %242 = vmatpush2.msra.mxu0 0.0
    %243 = vmatprep.subr.mxu0 0.0
    %244 = vmatpush2.msra.mxu0 0.0
    %245 = vmatprep.subr.mxu0 0.0
    %246 = vmatpush2.msra.mxu0 0.0
    %247 = vmatprep.subr.mxu0 0.0
    %248 = vmatpush2.msra.mxu0 0.0
    %249 = vmatprep.subr.mxu0 0.0
    %250 = vmatpush2.msra.mxu0 0.0
    %251 = vmatprep.subr.mxu0 0.0
    %252 = vmatpush2.msra.mxu0 0.0
    %253 = vmatprep.subr.mxu0 0.0
    %254 = vmatpush2.msra.mxu0 0.0
    %255 = vmatprep.subr.mxu0 0.0
    %256 = vmatpush2.msra.mxu0 0.0
    %257 = vmatprep.subr.mxu0 0.0
    %258 = vmatpush2.msra.mxu0 0.0
    %259 = vmatprep.subr.mxu0 0.0
    %260 = vmatpush2.msra.mxu0 0.0
    %261 = vmatprep.subr.mxu0 0.0
    %262 = vmatpush2.msra.mxu0 0.0
    %263 = vmatprep.subr.mxu0 0.0
    %264 = vmatpush2.msra.mxu0 0.0
    %265 = vmatprep.subr.mxu0 0.0
    %266 = vmatpush2.msra.mxu0 0.0
    %267 = vmatprep.subr.mxu0 0.0
    %268 = vmatpush2.msra.mxu0 0.0
    %269 = vmatprep.mubr.f32.mxu0 0.0
    %270 = vmatmul.mubr.f32.gmra.mxu0 %v203
    %v271 = vpop.f32.mrf.mxu0
    %v272 = vadd.f32 0.0, %v271
    %v273 = vpop.f32.mrf.mxu0
    %274 = vdwg.mxu0
    %v275 = vmul.f32 %v272, %v59
    %v276 = vpack.c.bf16 %v275, %v275
    %v277 = vld [vmem:[%s6] sm:$0xf]
    %v278 = vld [vmem:[%s6 + $0x4] sm:$0xf]
    %v279 = vld [vmem:[%s6 + $0x8] sm:$0xf]
    %v280 = vld [vmem:[%s6 + $0xc] sm:$0xf]
    %v285 = vunpack.c.l.b16 %v277
    %v286 = vunpack.c.l.b16 %v278
    %v287 = vunpack.c.l.b16 %v279
    %v288 = vunpack.c.l.b16 %v280
    %v289 = vpack.c.b16 %v286, %v285
    %v290 = vpack.c.b16 %v288, %v287
    %v292 = vsel %vm77, %v276, 0
    %v295 = vsel %vm77, %v289, 0
    %v298 = vsel %vm77, %v290, 0
    %300 = vmatprep.subr.bf16.mxu0 0
    %301 = vmatpush1.bf16.xpose.msra.mxu0 0
    %302 = vmatprep.subr.bf16.mxu0 0
    %303 = vmatpush1.bf16.xpose.msra.mxu0 0
    %304 = vmatprep.subr.bf16.mxu0 0
    %305 = vmatpush1.bf16.xpose.msra.mxu0 0
    %306 = vmatprep.subr.bf16.mxu0 0
    %307 = vmatpush1.bf16.xpose.msra.mxu0 0
    %308 = vmatprep.subr.bf16.mxu0 0
    %309 = vmatpush1.bf16.xpose.msra.mxu0 0
    %310 = vmatprep.subr.bf16.mxu0 0
    %311 = vmatpush1.bf16.xpose.msra.mxu0 0
    %312 = vmatprep.subr.bf16.mxu0 0
    %313 = vmatpush1.bf16.xpose.msra.mxu0 %v298
    %314 = vmatprep.subr.bf16.mxu0 0
    %315 = vmatpush1.bf16.xpose.msra.mxu0 %v295
    %316 = vmatprep.subr.bf16.mxu0 0
    %317 = vmatpush2.bf16.xpose.msra.mxu0 0
    %318 = vmatprep.subr.bf16.mxu0 0
    %319 = vmatpush2.bf16.xpose.msra.mxu0 0
    %320 = vmatprep.subr.bf16.mxu0 0
    %321 = vmatpush2.bf16.xpose.msra.mxu0 0
    %322 = vmatprep.subr.bf16.mxu0 0
    %323 = vmatpush2.bf16.xpose.msra.mxu0 0
    %324 = vmatprep.subr.bf16.mxu0 0
    %325 = vmatpush2.bf16.xpose.msra.mxu0 0
    %326 = vmatprep.subr.bf16.mxu0 0
    %327 = vmatpush2.bf16.xpose.msra.mxu0 0
    %328 = vmatprep.subr.bf16.mxu0 0
    %329 = vmatpush2.bf16.xpose.msra.mxu0 0
    %330 = vmatprep.subr.bf16.mxu0 0
    %331 = vmatpush2.bf16.xpose.msra.mxu0 0
    %332 = vmatprep.mubr.bf16.mxu0 0
    %333 = vmatmul.mubr.bf16.gmra.mxu0 %v292
    %v334 = vpop.f32.mrf.mxu0
    %v335 = vadd.f32 0.0, %v334
    %v336 = vpop.f32.mrf.mxu0
    %v337 = vpop.f32.mrf.mxu0
    %v338 = vpop.f32.mrf.mxu0
    %339 = vdwg.mxu0
    %vm340 = vcmask 64512
    %v342 = vsel %vm340, %v60, 0
    %v345 = vsel %vm340, %v61, 0
    %347 = vmatprep.subr.mxu0 0.0
    %348 = vmatpush1.msra.mxu0 0.0
    %349 = vmatprep.subr.mxu0 0.0
    %350 = vmatpush1.msra.mxu0 0.0
    %351 = vmatprep.subr.mxu0 0.0
    %352 = vmatpush1.msra.mxu0 0.0
    %353 = vmatprep.subr.mxu0 0.0
    %354 = vmatpush1.msra.mxu0 0.0
    %355 = vmatprep.subr.mxu0 0.0
    %356 = vmatpush1.msra.mxu0 0.0
    %357 = vmatprep.subr.mxu0 0.0
    %358 = vmatpush1.msra.mxu0 0.0
    %359 = vmatprep.subr.mxu0 0.0
    %360 = vmatpush1.msra.mxu0 0.0
    %361 = vmatprep.subr.mxu0 0.0
    %362 = vmatpush1.msra.mxu0 0.0
    %363 = vmatprep.subr.mxu0 0.0
    %364 = vmatpush1.msra.mxu0 0.0
    %365 = vmatprep.subr.mxu0 0.0
    %366 = vmatpush1.msra.mxu0 0.0
    %367 = vmatprep.subr.mxu0 0.0
    %368 = vmatpush1.msra.mxu0 0.0
    %369 = vmatprep.subr.mxu0 0.0
    %370 = vmatpush1.msra.mxu0 0.0
    %371 = vmatprep.subr.mxu0 0.0
    %372 = vmatpush1.msra.mxu0 0.0
    %373 = vmatprep.subr.mxu0 0.0
    %374 = vmatpush1.msra.mxu0 0.0
    %375 = vmatprep.subr.mxu0 0.0
    %376 = vmatpush1.msra.mxu0 0.0
    %377 = vmatprep.subr.mxu0 0.0
    %378 = vmatpush1.msra.mxu0 %v335
    %379 = vmatprep.subr.mxu0 0.0
    %380 = vmatpush2.msra.mxu0 0.0
    %381 = vmatprep.subr.mxu0 0.0
    %382 = vmatpush2.msra.mxu0 0.0
    %383 = vmatprep.subr.mxu0 0.0
    %384 = vmatpush2.msra.mxu0 0.0
    %385 = vmatprep.subr.mxu0 0.0
    %386 = vmatpush2.msra.mxu0 0.0
    %387 = vmatprep.subr.mxu0 0.0
    %388 = vmatpush2.msra.mxu0 0.0
    %389 = vmatprep.subr.mxu0 0.0
    %390 = vmatpush2.msra.mxu0 0.0
    %391 = vmatprep.subr.mxu0 0.0
    %392 = vmatpush2.msra.mxu0 0.0
    %393 = vmatprep.subr.mxu0 0.0
    %394 = vmatpush2.msra.mxu0 0.0
    %395 = vmatprep.subr.mxu0 0.0
    %396 = vmatpush2.msra.mxu0 0.0
    %397 = vmatprep.subr.mxu0 0.0
    %398 = vmatpush2.msra.mxu0 0.0
    %399 = vmatprep.subr.mxu0 0.0
    %400 = vmatpush2.msra.mxu0 0.0
    %401 = vmatprep.subr.mxu0 0.0
    %402 = vmatpush2.msra.mxu0 0.0
    %403 = vmatprep.subr.mxu0 0.0
    %404 = vmatpush2.msra.mxu0 0.0
    %405 = vmatprep.subr.mxu0 0.0
    %406 = vmatpush2.msra.mxu0 0.0
    %407 = vmatprep.subr.mxu0 0.0
    %408 = vmatpush2.msra.mxu0 0.0
    %409 = vmatprep.subr.mxu0 0.0
    %410 = vmatpush2.msra.mxu0 0.0
    %411 = vmatprep.mubr.f32.mxu0 0.0
    %412 = vmatmul.mubr.f32.gmra.mxu0 %v342
    %v413 = vpop.f32.mrf.mxu0
    %v414 = vadd.f32 0.0, %v413
    %v415 = vpop.f32.mrf.mxu0
    %416 = vmatprep.mubr.f32.mxu0 0.0
    %417 = vmatmul.mubr.f32.gmra.mxu0 %v345
    %v418 = vpop.f32.mrf.mxu0
    %v419 = vadd.f32 0.0, %v418
    %v420 = vpop.f32.mrf.mxu0
    %421 = vdwg.mxu0
    %v422 = vadd.f32 %v52, %v414
    %v423 = vadd.f32 %v53, %v419
    %v424 = vld [vmem:[%s7] sm:$0x1]
    %v425 = vld [vmem:[%s8] sm:$0x1]
    %v426 = vsel %vm77, %v422, 0.0
    %427 = vadd.xlane.f32.xlu0 %v426
    %v428 = vpop.xlane.xlu0 %427
    %v429 = vsel %vm77, %v423, 0.0
    %430 = vadd.xlane.f32.xlu0 %v429
    %v431 = vpop.xlane.xlu0 %430
    %v432 = vrcp.pop 32.0
    %v433 = vmul.f32 %v428, %v432
    %v434 = vmul.f32 %v431, %v432
    %v435 = vsub.f32 %v422, %v433
    %v436 = vsub.f32 %v423, %v434
    %v437 = vmul.f32 %v435, %v435
    %v438 = vmul.f32 %v436, %v436
    %v439 = vsel %vm77, %v437, 0.0
    %440 = vadd.xlane.f32.xlu0 %v439
    %v441 = vpop.xlane.xlu0 %440
    %v442 = vsel %vm77, %v438, 0.0
    %443 = vadd.xlane.f32.xlu0 %v442
    %v444 = vpop.xlane.xlu0 %443
    %v445 = vmul.f32 %v441, %v432
    %v446 = vmul.f32 %v444, %v432
    %v447 = vadd.f32 %v445, 1e-05
    %v448 = vadd.f32 %v446, 1e-05
    %v449 = vrsqrt.pop %v447
    %v450 = vrsqrt.pop %v448
    %v451 = vmul.f32 %v435, %v449
    %v452 = vmul.f32 %v436, %v450
    %v454 = vlaneseq
    %v455 = vshrl.u32 %v454, 7
    %v456 = vsub.s32 0, %v455
    %v457 = vrot.slane %v424, %v456
    %v459 = vmul.f32 %v451, %v457
    %v460 = vmul.f32 %v452, %v457
    %v462 = vlaneseq
    %v463 = vshrl.u32 %v462, 7
    %v464 = vsub.s32 0, %v463
    %v465 = vrot.slane %v425, %v464
    %v467 = vadd.f32 %v459, %v465
    %v468 = vadd.f32 %v460, %v465
    %v469 = vpack.c.bf16 %v468, %v467
    %v470 = vld [vmem:[%s9] sm:$0xf]
    %v471 = vld [vmem:[%s9 + $0x4] sm:$0xf]
    %v472 = vld [vmem:[%s9 + $0x8] sm:$0xf]
    %v473 = vld [vmem:[%s9 + $0xc] sm:$0xf]
    %v474 = vld [vmem:[%s9 + $0x10] sm:$0xf]
    %v475 = vld [vmem:[%s9 + $0x14] sm:$0xf]
    %v476 = vld [vmem:[%s9 + $0x18] sm:$0xf]
    %v477 = vld [vmem:[%s9 + $0x1c] sm:$0xf]
    %v478 = vld [vmem:[%s10] sm:$0x1]
    %v480 = vlaneseq
    %v481 = vshrl.u32 %v480, 7
    %v482 = vsub.s32 0, %v481
    %v483 = vrot.slane %v478, %v482
    %v493 = vunpack.c.l.b16 %v470
    %v494 = vunpack.c.l.b16 %v471
    %v495 = vunpack.c.l.b16 %v472
    %v496 = vunpack.c.l.b16 %v473
    %v497 = vunpack.c.l.b16 %v474
    %v498 = vunpack.c.l.b16 %v475
    %v499 = vunpack.c.l.b16 %v476
    %v500 = vunpack.c.l.b16 %v477
    %v501 = vpack.c.b16 %v494, %v493
    %v502 = vpack.c.b16 %v496, %v495
    %v503 = vpack.c.b16 %v498, %v497
    %v504 = vpack.c.b16 %v500, %v499
    %v506 = vsel %vm77, %v469, 0
    %v509 = vsel %vm77, %v501, 0
    %v512 = vsel %vm77, %v502, 0
    %v515 = vsel %vm77, %v503, 0
    %v518 = vsel %vm77, %v504, 0
    %520 = vmatprep.subr.bf16.mxu0 0
    %521 = vmatpush1.bf16.xpose.msra.mxu0 0
    %522 = vmatprep.subr.bf16.mxu0 0
    %523 = vmatpush1.bf16.xpose.msra.mxu0 0
    %524 = vmatprep.subr.bf16.mxu0 0
    %525 = vmatpush1.bf16.xpose.msra.mxu0 0
    %526 = vmatprep.subr.bf16.mxu0 0
    %527 = vmatpush1.bf16.xpose.msra.mxu0 0
    %528 = vmatprep.subr.bf16.mxu0 0
    %529 = vmatpush1.bf16.xpose.msra.mxu0 %v518
    %530 = vmatprep.subr.bf16.mxu0 0
    %531 = vmatpush1.bf16.xpose.msra.mxu0 %v515
    %532 = vmatprep.subr.bf16.mxu0 0
    %533 = vmatpush1.bf16.xpose.msra.mxu0 %v512
    %534 = vmatprep.subr.bf16.mxu0 0
    %535 = vmatpush1.bf16.xpose.msra.mxu0 %v509
    %536 = vmatprep.subr.bf16.mxu0 0
    %537 = vmatpush2.bf16.xpose.msra.mxu0 0
    %538 = vmatprep.subr.bf16.mxu0 0
    %539 = vmatpush2.bf16.xpose.msra.mxu0 0
    %540 = vmatprep.subr.bf16.mxu0 0
    %541 = vmatpush2.bf16.xpose.msra.mxu0 0
    %542 = vmatprep.subr.bf16.mxu0 0
    %543 = vmatpush2.bf16.xpose.msra.mxu0 0
    %544 = vmatprep.subr.bf16.mxu0 0
    %545 = vmatpush2.bf16.xpose.msra.mxu0 0
    %546 = vmatprep.subr.bf16.mxu0 0
    %547 = vmatpush2.bf16.xpose.msra.mxu0 0
    %548 = vmatprep.subr.bf16.mxu0 0
    %549 = vmatpush2.bf16.xpose.msra.mxu0 0
    %550 = vmatprep.subr.bf16.mxu0 0
    %551 = vmatpush2.bf16.xpose.msra.mxu0 0
    %552 = vmatprep.mubr.bf16.mxu0 0
    %553 = vmatmul.mubr.bf16.gmra.mxu0 %v506
    %v554 = vpop.f32.mrf.mxu0
    %v555 = vadd.f32 %v483, %v554
    %v556 = vpop.f32.mrf.mxu0
    %v557 = vpop.f32.mrf.mxu0
    %v558 = vadd.f32 %v483, %v557
    %v559 = vpop.f32.mrf.mxu0
    %560 = vdwg.mxu0
    %v561 = vmax.f32 %v555, 0.0
    %v562 = vmax.f32 %v558, 0.0
    %v563 = vpack.c.bf16 %v562, %v561
    %v564 = vld [vmem:[%s11] sm:$0xf]
    %v565 = vld [vmem:[%s11 + $0x4] sm:$0xf]
    %v566 = vld [vmem:[%s11 + $0x8] sm:$0xf]
    %v567 = vld [vmem:[%s11 + $0xc] sm:$0xf]
    %v568 = vld [vmem:[%s12] sm:$0x1]
    %v570 = vlaneseq
    %v571 = vshrl.u32 %v570, 7
    %v572 = vsub.s32 0, %v571
    %v573 = vrot.slane %v568, %v572
    %v579 = vunpack.c.l.b16 %v564
    %v580 = vunpack.c.l.b16 %v565
    %v581 = vunpack.c.l.b16 %v566
    %v582 = vunpack.c.l.b16 %v567
    %v583 = vpack.c.b16 %v580, %v579
    %v584 = vpack.c.b16 %v582, %v581
    %vm585 = vcmask 523264
    %v587 = vsel %vm585, %v563, 0
    %v590 = vsel %vm585, %v583, 0
    %v593 = vsel %vm585, %v584, 0
    %595 = vmatprep.subr.bf16.mxu0 0
    %596 = vmatpush1.bf16.xpose.msra.mxu0 0
    %597 = vmatprep.subr.bf16.mxu0 0
    %598 = vmatpush1.bf16.xpose.msra.mxu0 0
    %599 = vmatprep.subr.bf16.mxu0 0
    %600 = vmatpush1.bf16.xpose.msra.mxu0 0
    %601 = vmatprep.subr.bf16.mxu0 0
    %602 = vmatpush1.bf16.xpose.msra.mxu0 0
    %603 = vmatprep.subr.bf16.mxu0 0
    %604 = vmatpush1.bf16.xpose.msra.mxu0 0
    %605 = vmatprep.subr.bf16.mxu0 0
    %606 = vmatpush1.bf16.xpose.msra.mxu0 0
    %607 = vmatprep.subr.bf16.mxu0 0
    %608 = vmatpush1.bf16.xpose.msra.mxu0 %v593
    %609 = vmatprep.subr.bf16.mxu0 0
    %610 = vmatpush1.bf16.xpose.msra.mxu0 %v590
    %611 = vmatprep.subr.bf16.mxu0 0
    %612 = vmatpush2.bf16.xpose.msra.mxu0 0
    %613 = vmatprep.subr.bf16.mxu0 0
    %614 = vmatpush2.bf16.xpose.msra.mxu0 0
    %615 = vmatprep.subr.bf16.mxu0 0
    %616 = vmatpush2.bf16.xpose.msra.mxu0 0
    %617 = vmatprep.subr.bf16.mxu0 0
    %618 = vmatpush2.bf16.xpose.msra.mxu0 0
    %619 = vmatprep.subr.bf16.mxu0 0
    %620 = vmatpush2.bf16.xpose.msra.mxu0 0
    %621 = vmatprep.subr.bf16.mxu0 0
    %622 = vmatpush2.bf16.xpose.msra.mxu0 0
    %623 = vmatprep.subr.bf16.mxu0 0
    %624 = vmatpush2.bf16.xpose.msra.mxu0 0
    %625 = vmatprep.subr.bf16.mxu0 0
    %626 = vmatpush2.bf16.xpose.msra.mxu0 0
    %627 = vmatprep.mubr.bf16.mxu0 0
    %628 = vmatmul.mubr.bf16.gmra.mxu0 %v587
    %v629 = vpop.f32.mrf.mxu0
    %v630 = vadd.f32 %v573, %v629
    %v631 = vpop.f32.mrf.mxu0
    %v632 = vpop.f32.mrf.mxu0
    %v633 = vadd.f32 %v573, %v632
    %v634 = vpop.f32.mrf.mxu0
    %635 = vdwg.mxu0
    %v636 = vadd.f32 %v630, %v467
    %v637 = vadd.f32 %v633, %v468
    %v638 = vld [vmem:[%s13] sm:$0x1]
    %v639 = vld [vmem:[%s14] sm:$0x1]
    %v640 = vsel %vm77, %v636, 0.0
    %641 = vadd.xlane.f32.xlu0 %v640
    %v642 = vpop.xlane.xlu0 %641
    %v643 = vsel %vm77, %v637, 0.0
    %644 = vadd.xlane.f32.xlu0 %v643
    %v645 = vpop.xlane.xlu0 %644
    %v646 = vmul.f32 %v642, %v432
    %v647 = vmul.f32 %v645, %v432
    %v648 = vsub.f32 %v636, %v646
    %v649 = vsub.f32 %v637, %v647
    %v650 = vmul.f32 %v648, %v648
    %v651 = vmul.f32 %v649, %v649
    %v652 = vsel %vm77, %v650, 0.0
    %653 = vadd.xlane.f32.xlu0 %v652
    %v654 = vpop.xlane.xlu0 %653
    %v655 = vsel %vm77, %v651, 0.0
    %656 = vadd.xlane.f32.xlu0 %v655
    %v657 = vpop.xlane.xlu0 %656
    %v658 = vmul.f32 %v654, %v432
    %v659 = vmul.f32 %v657, %v432
    %v660 = vadd.f32 %v658, 1e-05
    %v661 = vadd.f32 %v659, 1e-05
    %v662 = vrsqrt.pop %v660
    %v663 = vrsqrt.pop %v661
    %v664 = vmul.f32 %v648, %v662
    %v665 = vmul.f32 %v649, %v663
    %v667 = vlaneseq
    %v668 = vshrl.u32 %v667, 7
    %v669 = vsub.s32 0, %v668
    %v670 = vrot.slane %v638, %v669
    %v672 = vmul.f32 %v664, %v670
    %v673 = vmul.f32 %v665, %v670
    %v675 = vlaneseq
    %v676 = vshrl.u32 %v675, 7
    %v677 = vsub.s32 0, %v676
    %v678 = vrot.slane %v639, %v677
    %v680 = vadd.f32 %v672, %v678
    %v681 = vadd.f32 %v673, %v678
    %v682 = vpack.c.bf16 %v681, %v680
    %s683 = scalar_lea.vmem %s5, 16
    %v684 = vld [vmem:[%s683] sm:$0xf]
    %v685 = vld [vmem:[%s683 + $0x4] sm:$0xf]
    %v686 = vld [vmem:[%s683 + $0x8] sm:$0xf]
    %v687 = vld [vmem:[%s683 + $0xc] sm:$0xf]
    %v692 = vunpack.c.l.b16 %v684
    %v693 = vunpack.c.l.b16 %v685
    %v694 = vunpack.c.l.b16 %v686
    %v695 = vunpack.c.l.b16 %v687
    %v696 = vpack.c.b16 %v693, %v692
    %v697 = vpack.c.b16 %v695, %v694
    %v699 = vsel %vm77, %v682, 0
    %v702 = vsel %vm77, %v696, 0
    %v705 = vsel %vm77, %v697, 0
    %707 = vmatprep.subr.bf16.mxu0 0
    %708 = vmatpush1.bf16.xpose.msra.mxu0 0
    %709 = vmatprep.subr.bf16.mxu0 0
    %710 = vmatpush1.bf16.xpose.msra.mxu0 0
    %711 = vmatprep.subr.bf16.mxu0 0
    %712 = vmatpush1.bf16.xpose.msra.mxu0 0
    %713 = vmatprep.subr.bf16.mxu0 0
    %714 = vmatpush1.bf16.xpose.msra.mxu0 0
    %715 = vmatprep.subr.bf16.mxu0 0
    %716 = vmatpush1.bf16.xpose.msra.mxu0 0
    %717 = vmatprep.subr.bf16.mxu0 0
    %718 = vmatpush1.bf16.xpose.msra.mxu0 0
    %719 = vmatprep.subr.bf16.mxu0 0
    %720 = vmatpush1.bf16.xpose.msra.mxu0 %v705
    %721 = vmatprep.subr.bf16.mxu0 0
    %722 = vmatpush1.bf16.xpose.msra.mxu0 %v702
    %723 = vmatprep.subr.bf16.mxu0 0
    %724 = vmatpush2.bf16.xpose.msra.mxu0 0
    %725 = vmatprep.subr.bf16.mxu0 0
    %726 = vmatpush2.bf16.xpose.msra.mxu0 0
    %727 = vmatprep.subr.bf16.mxu0 0
    %728 = vmatpush2.bf16.xpose.msra.mxu0 0
    %729 = vmatprep.subr.bf16.mxu0 0
    %730 = vmatpush2.bf16.xpose.msra.mxu0 0
    %731 = vmatprep.subr.bf16.mxu0 0
    %732 = vmatpush2.bf16.xpose.msra.mxu0 0
    %733 = vmatprep.subr.bf16.mxu0 0
    %734 = vmatpush2.bf16.xpose.msra.mxu0 0
    %735 = vmatprep.subr.bf16.mxu0 0
    %736 = vmatpush2.bf16.xpose.msra.mxu0 0
    %737 = vmatprep.subr.bf16.mxu0 0
    %738 = vmatpush2.bf16.xpose.msra.mxu0 0
    %739 = vmatprep.mubr.bf16.mxu0 0
    %740 = vmatmul.mubr.bf16.gmra.mxu0 %v699
    %v741 = vpop.f32.mrf.mxu0
    %v742 = vadd.f32 0.0, %v741
    %v743 = vpop.f32.mrf.mxu0
    %v744 = vpop.f32.mrf.mxu0
    %v745 = vadd.f32 0.0, %v744
    %v746 = vpop.f32.mrf.mxu0
    %747 = vdwg.mxu0
    %748 = vmatprep.subr.mxu0 0.0
    %749 = vmatpush1.msra.mxu0 0.0
    %750 = vmatprep.subr.mxu0 0.0
    %751 = vmatpush1.msra.mxu0 0.0
    %752 = vmatprep.subr.mxu0 0.0
    %753 = vmatpush1.msra.mxu0 0.0
    %754 = vmatprep.subr.mxu0 0.0
    %755 = vmatpush1.msra.mxu0 0.0
    %756 = vmatprep.subr.mxu0 0.0
    %757 = vmatpush1.msra.mxu0 0.0
    %758 = vmatprep.subr.mxu0 0.0
    %759 = vmatpush1.msra.mxu0 0.0
    %760 = vmatprep.subr.mxu0 0.0
    %761 = vmatpush1.msra.mxu0 0.0
    %762 = vmatprep.subr.mxu0 0.0
    %763 = vmatpush1.msra.mxu0 0.0
    %764 = vmatprep.subr.mxu0 0.0
    %765 = vmatpush1.msra.mxu0 0.0
    %766 = vmatprep.subr.mxu0 0.0
    %767 = vmatpush1.msra.mxu0 0.0
    %768 = vmatprep.subr.mxu0 0.0
    %769 = vmatpush1.msra.mxu0 0.0
    %770 = vmatprep.subr.mxu0 0.0
    %771 = vmatpush1.msra.mxu0 0.0
    %772 = vmatprep.subr.mxu0 0.0
    %773 = vmatpush1.msra.mxu0 0.0
    %774 = vmatprep.subr.mxu0 0.0
    %775 = vmatpush1.msra.mxu0 0.0
    %776 = vmatprep.subr.mxu0 0.0
    %777 = vmatpush1.msra.mxu0 %v745
    %778 = vmatprep.subr.mxu0 0.0
    %779 = vmatpush1.msra.mxu0 %v742
    %780 = vmatprep.subr.mxu0 0.0
    %781 = vmatpush2.msra.mxu0 0.0
    %782 = vmatprep.subr.mxu0 0.0
    %783 = vmatpush2.msra.mxu0 0.0
    %784 = vmatprep.subr.mxu0 0.0
    %785 = vmatpush2.msra.mxu0 0.0
    %786 = vmatprep.subr.mxu0 0.0
    %787 = vmatpush2.msra.mxu0 0.0
    %788 = vmatprep.subr.mxu0 0.0
    %789 = vmatpush2.msra.mxu0 0.0
    %790 = vmatprep.subr.mxu0 0.0
    %791 = vmatpush2.msra.mxu0 0.0
    %792 = vmatprep.subr.mxu0 0.0
    %793 = vmatpush2.msra.mxu0 0.0
    %794 = vmatprep.subr.mxu0 0.0
    %795 = vmatpush2.msra.mxu0 0.0
    %796 = vmatprep.subr.mxu0 0.0
    %797 = vmatpush2.msra.mxu0 0.0
    %798 = vmatprep.subr.mxu0 0.0
    %799 = vmatpush2.msra.mxu0 0.0
    %800 = vmatprep.subr.mxu0 0.0
    %801 = vmatpush2.msra.mxu0 0.0
    %802 = vmatprep.subr.mxu0 0.0
    %803 = vmatpush2.msra.mxu0 0.0
    %804 = vmatprep.subr.mxu0 0.0
    %805 = vmatpush2.msra.mxu0 0.0
    %806 = vmatprep.subr.mxu0 0.0
    %807 = vmatpush2.msra.mxu0 0.0
    %808 = vmatprep.subr.mxu0 0.0
    %809 = vmatpush2.msra.mxu0 0.0
    %810 = vmatprep.subr.mxu0 0.0
    %811 = vmatpush2.msra.mxu0 0.0
    %812 = vmatprep.mubr.f32.mxu0 0.0
    %813 = vmatmul.mubr.f32.gmra.mxu0 %v130
    %v814 = vpop.f32.mrf.mxu0
    %v815 = vadd.f32 0.0, %v814
    %v816 = vpop.f32.mrf.mxu0
    %817 = vdwg.mxu0
    %v819 = vsel %vm77, %v815, 0
    %821 = vmatprep.subr.mxu0 0.0
    %822 = vmatpush1.msra.mxu0 0.0
    %823 = vmatprep.subr.mxu0 0.0
    %824 = vmatpush1.msra.mxu0 0.0
    %825 = vmatprep.subr.mxu0 0.0
    %826 = vmatpush1.msra.mxu0 0.0
    %827 = vmatprep.subr.mxu0 0.0
    %828 = vmatpush1.msra.mxu0 0.0
    %829 = vmatprep.subr.mxu0 0.0
    %830 = vmatpush1.msra.mxu0 0.0
    %831 = vmatprep.subr.mxu0 0.0
    %832 = vmatpush1.msra.mxu0 0.0
    %833 = vmatprep.subr.mxu0 0.0
    %834 = vmatpush1.msra.mxu0 0.0
    %835 = vmatprep.subr.mxu0 0.0
    %836 = vmatpush1.msra.mxu0 0.0
    %837 = vmatprep.subr.mxu0 0.0
    %838 = vmatpush1.msra.mxu0 0.0
    %839 = vmatprep.subr.mxu0 0.0
    %840 = vmatpush1.msra.mxu0 0.0
    %841 = vmatprep.subr.mxu0 0.0
    %842 = vmatpush1.msra.mxu0 0.0
    %843 = vmatprep.subr.mxu0 0.0
    %844 = vmatpush1.msra.mxu0 0.0
    %845 = vmatprep.subr.mxu0 0.0
    %846 = vmatpush1.msra.mxu0 %v58
    %847 = vmatprep.subr.mxu0 0.0
    %848 = vmatpush1.msra.mxu0 %v57
    %849 = vmatprep.subr.mxu0 0.0
    %850 = vmatpush1.msra.mxu0 %v56
    %851 = vmatprep.subr.mxu0 0.0
    %852 = vmatpush1.msra.mxu0 %v55
    %853 = vmatprep.subr.mxu0 0.0
    %854 = vmatpush2.msra.mxu0 0.0
    %855 = vmatprep.subr.mxu0 0.0
    %856 = vmatpush2.msra.mxu0 0.0
    %857 = vmatprep.subr.mxu0 0.0
    %858 = vmatpush2.msra.mxu0 0.0
    %859 = vmatprep.subr.mxu0 0.0
    %860 = vmatpush2.msra.mxu0 0.0
    %861 = vmatprep.subr.mxu0 0.0
    %862 = vmatpush2.msra.mxu0 0.0
    %863 = vmatprep.subr.mxu0 0.0
    %864 = vmatpush2.msra.mxu0 0.0
    %865 = vmatprep.subr.mxu0 0.0
    %866 = vmatpush2.msra.mxu0 0.0
    %867 = vmatprep.subr.mxu0 0.0
    %868 = vmatpush2.msra.mxu0 0.0
    %869 = vmatprep.subr.mxu0 0.0
    %870 = vmatpush2.msra.mxu0 0.0
    %871 = vmatprep.subr.mxu0 0.0
    %872 = vmatpush2.msra.mxu0 0.0
    %873 = vmatprep.subr.mxu0 0.0
    %874 = vmatpush2.msra.mxu0 0.0
    %875 = vmatprep.subr.mxu0 0.0
    %876 = vmatpush2.msra.mxu0 0.0
    %877 = vmatprep.subr.mxu0 0.0
    %878 = vmatpush2.msra.mxu0 0.0
    %879 = vmatprep.subr.mxu0 0.0
    %880 = vmatpush2.msra.mxu0 0.0
    %881 = vmatprep.subr.mxu0 0.0
    %882 = vmatpush2.msra.mxu0 0.0
    %883 = vmatprep.subr.mxu0 0.0
    %884 = vmatpush2.msra.mxu0 0.0
    %885 = vmatprep.mubr.f32.mxu0 0.0
    %886 = vmatmul.mubr.f32.gmra.mxu0 %v819
    %v887 = vpop.f32.mrf.mxu0
    %v888 = vadd.f32 0.0, %v887
    %v889 = vpop.f32.mrf.mxu0
    %890 = vdwg.mxu0
    %v891 = vmul.f32 %v888, %v59
    %v892 = vpack.c.bf16 %v891, %v891
    %s893 = scalar_lea.vmem %s6, 16
    %v894 = vld [vmem:[%s893] sm:$0xf]
    %v895 = vld [vmem:[%s893 + $0x4] sm:$0xf]
    %v896 = vld [vmem:[%s893 + $0x8] sm:$0xf]
    %v897 = vld [vmem:[%s893 + $0xc] sm:$0xf]
    %v902 = vunpack.c.l.b16 %v894
    %v903 = vunpack.c.l.b16 %v895
    %v904 = vunpack.c.l.b16 %v896
    %v905 = vunpack.c.l.b16 %v897
    %v906 = vpack.c.b16 %v903, %v902
    %v907 = vpack.c.b16 %v905, %v904
    %v909 = vsel %vm77, %v892, 0
    %v912 = vsel %vm77, %v906, 0
    %v915 = vsel %vm77, %v907, 0
    %917 = vmatprep.subr.bf16.mxu0 0
    %918 = vmatpush1.bf16.xpose.msra.mxu0 0
    %919 = vmatprep.subr.bf16.mxu0 0
    %920 = vmatpush1.bf16.xpose.msra.mxu0 0
    %921 = vmatprep.subr.bf16.mxu0 0
    %922 = vmatpush1.bf16.xpose.msra.mxu0 0
    %923 = vmatprep.subr.bf16.mxu0 0
    %924 = vmatpush1.bf16.xpose.msra.mxu0 0
    %925 = vmatprep.subr.bf16.mxu0 0
    %926 = vmatpush1.bf16.xpose.msra.mxu0 0
    %927 = vmatprep.subr.bf16.mxu0 0
    %928 = vmatpush1.bf16.xpose.msra.mxu0 0
    %929 = vmatprep.subr.bf16.mxu0 0
    %930 = vmatpush1.bf16.xpose.msra.mxu0 %v915
    %931 = vmatprep.subr.bf16.mxu0 0
    %932 = vmatpush1.bf16.xpose.msra.mxu0 %v912
    %933 = vmatprep.subr.bf16.mxu0 0
    %934 = vmatpush2.bf16.xpose.msra.mxu0 0
    %935 = vmatprep.subr.bf16.mxu0 0
    %936 = vmatpush2.bf16.xpose.msra.mxu0 0
    %937 = vmatprep.subr.bf16.mxu0 0
    %938 = vmatpush2.bf16.xpose.msra.mxu0 0
    %939 = vmatprep.subr.bf16.mxu0 0
    %940 = vmatpush2.bf16.xpose.msra.mxu0 0
    %941 = vmatprep.subr.bf16.mxu0 0
    %942 = vmatpush2.bf16.xpose.msra.mxu0 0
    %943 = vmatprep.subr.bf16.mxu0 0
    %944 = vmatpush2.bf16.xpose.msra.mxu0 0
    %945 = vmatprep.subr.bf16.mxu0 0
    %946 = vmatpush2.bf16.xpose.msra.mxu0 0
    %947 = vmatprep.subr.bf16.mxu0 0
    %948 = vmatpush2.bf16.xpose.msra.mxu0 0
    %949 = vmatprep.mubr.bf16.mxu0 0
    %950 = vmatmul.mubr.bf16.gmra.mxu0 %v909
    %v951 = vpop.f32.mrf.mxu0
    %v952 = vadd.f32 0.0, %v951
    %v953 = vpop.f32.mrf.mxu0
    %v954 = vpop.f32.mrf.mxu0
    %v955 = vpop.f32.mrf.mxu0
    %956 = vdwg.mxu0
    %957 = vmatprep.subr.mxu0 0.0
    %958 = vmatpush1.msra.mxu0 0.0
    %959 = vmatprep.subr.mxu0 0.0
    %960 = vmatpush1.msra.mxu0 0.0
    %961 = vmatprep.subr.mxu0 0.0
    %962 = vmatpush1.msra.mxu0 0.0
    %963 = vmatprep.subr.mxu0 0.0
    %964 = vmatpush1.msra.mxu0 0.0
    %965 = vmatprep.subr.mxu0 0.0
    %966 = vmatpush1.msra.mxu0 0.0
    %967 = vmatprep.subr.mxu0 0.0
    %968 = vmatpush1.msra.mxu0 0.0
    %969 = vmatprep.subr.mxu0 0.0
    %970 = vmatpush1.msra.mxu0 0.0
    %971 = vmatprep.subr.mxu0 0.0
    %972 = vmatpush1.msra.mxu0 0.0
    %973 = vmatprep.subr.mxu0 0.0
    %974 = vmatpush1.msra.mxu0 0.0
    %975 = vmatprep.subr.mxu0 0.0
    %976 = vmatpush1.msra.mxu0 0.0
    %977 = vmatprep.subr.mxu0 0.0
    %978 = vmatpush1.msra.mxu0 0.0
    %979 = vmatprep.subr.mxu0 0.0
    %980 = vmatpush1.msra.mxu0 0.0
    %981 = vmatprep.subr.mxu0 0.0
    %982 = vmatpush1.msra.mxu0 0.0
    %983 = vmatprep.subr.mxu0 0.0
    %984 = vmatpush1.msra.mxu0 0.0
    %985 = vmatprep.subr.mxu0 0.0
    %986 = vmatpush1.msra.mxu0 0.0
    %987 = vmatprep.subr.mxu0 0.0
    %988 = vmatpush1.msra.mxu0 %v952
    %989 = vmatprep.subr.mxu0 0.0
    %990 = vmatpush2.msra.mxu0 0.0
    %991 = vmatprep.subr.mxu0 0.0
    %992 = vmatpush2.msra.mxu0 0.0
    %993 = vmatprep.subr.mxu0 0.0
    %994 = vmatpush2.msra.mxu0 0.0
    %995 = vmatprep.subr.mxu0 0.0
    %996 = vmatpush2.msra.mxu0 0.0
    %997 = vmatprep.subr.mxu0 0.0
    %998 = vmatpush2.msra.mxu0 0.0
    %999 = vmatprep.subr.mxu0 0.0
    %1000 = vmatpush2.msra.mxu0 0.0
    %1001 = vmatprep.subr.mxu0 0.0
    %1002 = vmatpush2.msra.mxu0 0.0
    %1003 = vmatprep.subr.mxu0 0.0
    %1004 = vmatpush2.msra.mxu0 0.0
    %1005 = vmatprep.subr.mxu0 0.0
    %1006 = vmatpush2.msra.mxu0 0.0
    %1007 = vmatprep.subr.mxu0 0.0
    %1008 = vmatpush2.msra.mxu0 0.0
    %1009 = vmatprep.subr.mxu0 0.0
    %1010 = vmatpush2.msra.mxu0 0.0
    %1011 = vmatprep.subr.mxu0 0.0
    %1012 = vmatpush2.msra.mxu0 0.0
    %1013 = vmatprep.subr.mxu0 0.0
    %1014 = vmatpush2.msra.mxu0 0.0
    %1015 = vmatprep.subr.mxu0 0.0
    %1016 = vmatpush2.msra.mxu0 0.0
    %1017 = vmatprep.subr.mxu0 0.0
    %1018 = vmatpush2.msra.mxu0 0.0
    %1019 = vmatprep.subr.mxu0 0.0
    %1020 = vmatpush2.msra.mxu0 0.0
    %1021 = vmatprep.mubr.f32.mxu0 0.0
    %1022 = vmatmul.mubr.f32.gmra.mxu0 %v342
    %v1023 = vpop.f32.mrf.mxu0
    %v1024 = vadd.f32 0.0, %v1023
    %v1025 = vpop.f32.mrf.mxu0
    %1026 = vmatprep.mubr.f32.mxu0 0.0
    %1027 = vmatmul.mubr.f32.gmra.mxu0 %v345
    %v1028 = vpop.f32.mrf.mxu0
    %v1029 = vadd.f32 0.0, %v1028
    %v1030 = vpop.f32.mrf.mxu0
    %1031 = vdwg.mxu0
    %v1032 = vadd.f32 %v680, %v1024
    %v1033 = vadd.f32 %v681, %v1029
    %s1034 = scalar_lea.vmem %s7, 1
    %v1035 = vld [vmem:[%s1034] sm:$0x1]
    %s1036 = scalar_lea.vmem %s8, 1
    %v1037 = vld [vmem:[%s1036] sm:$0x1]
    %v1038 = vsel %vm77, %v1032, 0.0
    %1039 = vadd.xlane.f32.xlu0 %v1038
    %v1040 = vpop.xlane.xlu0 %1039
    %v1041 = vsel %vm77, %v1033, 0.0
    %1042 = vadd.xlane.f32.xlu0 %v1041
    %v1043 = vpop.xlane.xlu0 %1042
    %v1044 = vmul.f32 %v1040, %v432
    %v1045 = vmul.f32 %v1043, %v432
    %v1046 = vsub.f32 %v1032, %v1044
    %v1047 = vsub.f32 %v1033, %v1045
    %v1048 = vmul.f32 %v1046, %v1046
    %v1049 = vmul.f32 %v1047, %v1047
    %v1050 = vsel %vm77, %v1048, 0.0
    %1051 = vadd.xlane.f32.xlu0 %v1050
    %v1052 = vpop.xlane.xlu0 %1051
    %v1053 = vsel %vm77, %v1049, 0.0
    %1054 = vadd.xlane.f32.xlu0 %v1053
    %v1055 = vpop.xlane.xlu0 %1054
    %v1056 = vmul.f32 %v1052, %v432
    %v1057 = vmul.f32 %v1055, %v432
    %v1058 = vadd.f32 %v1056, 1e-05
    %v1059 = vadd.f32 %v1057, 1e-05
    %v1060 = vrsqrt.pop %v1058
    %v1061 = vrsqrt.pop %v1059
    %v1062 = vmul.f32 %v1046, %v1060
    %v1063 = vmul.f32 %v1047, %v1061
    %v1065 = vlaneseq
    %v1066 = vshrl.u32 %v1065, 7
    %v1067 = vsub.s32 0, %v1066
    %v1068 = vrot.slane %v1035, %v1067
    %v1070 = vmul.f32 %v1062, %v1068
    %v1071 = vmul.f32 %v1063, %v1068
    %v1073 = vlaneseq
    %v1074 = vshrl.u32 %v1073, 7
    %v1075 = vsub.s32 0, %v1074
    %v1076 = vrot.slane %v1037, %v1075
    %v1078 = vadd.f32 %v1070, %v1076
    %v1079 = vadd.f32 %v1071, %v1076
    %v1080 = vpack.c.bf16 %v1079, %v1078
    %s1081 = scalar_lea.vmem %s9, 32
    %v1082 = vld [vmem:[%s1081] sm:$0xf]
    %v1083 = vld [vmem:[%s1081 + $0x4] sm:$0xf]
    %v1084 = vld [vmem:[%s1081 + $0x8] sm:$0xf]
    %v1085 = vld [vmem:[%s1081 + $0xc] sm:$0xf]
    %v1086 = vld [vmem:[%s1081 + $0x10] sm:$0xf]
    %v1087 = vld [vmem:[%s1081 + $0x14] sm:$0xf]
    %v1088 = vld [vmem:[%s1081 + $0x18] sm:$0xf]
    %v1089 = vld [vmem:[%s1081 + $0x1c] sm:$0xf]
    %s1090 = scalar_lea.vmem %s10, 1
    %v1091 = vld [vmem:[%s1090] sm:$0x1]
    %v1093 = vlaneseq
    %v1094 = vshrl.u32 %v1093, 7
    %v1095 = vsub.s32 0, %v1094
    %v1096 = vrot.slane %v1091, %v1095
    %v1106 = vunpack.c.l.b16 %v1082
    %v1107 = vunpack.c.l.b16 %v1083
    %v1108 = vunpack.c.l.b16 %v1084
    %v1109 = vunpack.c.l.b16 %v1085
    %v1110 = vunpack.c.l.b16 %v1086
    %v1111 = vunpack.c.l.b16 %v1087
    %v1112 = vunpack.c.l.b16 %v1088
    %v1113 = vunpack.c.l.b16 %v1089
    %v1114 = vpack.c.b16 %v1107, %v1106
    %v1115 = vpack.c.b16 %v1109, %v1108
    %v1116 = vpack.c.b16 %v1111, %v1110
    %v1117 = vpack.c.b16 %v1113, %v1112
    %v1119 = vsel %vm77, %v1080, 0
    %v1122 = vsel %vm77, %v1114, 0
    %v1125 = vsel %vm77, %v1115, 0
    %v1128 = vsel %vm77, %v1116, 0
    %v1131 = vsel %vm77, %v1117, 0
    %1133 = vmatprep.subr.bf16.mxu0 0
    %1134 = vmatpush1.bf16.xpose.msra.mxu0 0
    %1135 = vmatprep.subr.bf16.mxu0 0
    %1136 = vmatpush1.bf16.xpose.msra.mxu0 0
    %1137 = vmatprep.subr.bf16.mxu0 0
    %1138 = vmatpush1.bf16.xpose.msra.mxu0 0
    %1139 = vmatprep.subr.bf16.mxu0 0
    %1140 = vmatpush1.bf16.xpose.msra.mxu0 0
    %1141 = vmatprep.subr.bf16.mxu0 0
    %1142 = vmatpush1.bf16.xpose.msra.mxu0 %v1131
    %1143 = vmatprep.subr.bf16.mxu0 0
    %1144 = vmatpush1.bf16.xpose.msra.mxu0 %v1128
    %1145 = vmatprep.subr.bf16.mxu0 0
    %1146 = vmatpush1.bf16.xpose.msra.mxu0 %v1125
    %1147 = vmatprep.subr.bf16.mxu0 0
    %1148 = vmatpush1.bf16.xpose.msra.mxu0 %v1122
    %1149 = vmatprep.subr.bf16.mxu0 0
    %1150 = vmatpush2.bf16.xpose.msra.mxu0 0
    %1151 = vmatprep.subr.bf16.mxu0 0
    %1152 = vmatpush2.bf16.xpose.msra.mxu0 0
    %1153 = vmatprep.subr.bf16.mxu0 0
    %1154 = vmatpush2.bf16.xpose.msra.mxu0 0
    %1155 = vmatprep.subr.bf16.mxu0 0
    %1156 = vmatpush2.bf16.xpose.msra.mxu0 0
    %1157 = vmatprep.subr.bf16.mxu0 0
    %1158 = vmatpush2.bf16.xpose.msra.mxu0 0
    %1159 = vmatprep.subr.bf16.mxu0 0
    %1160 = vmatpush2.bf16.xpose.msra.mxu0 0
    %1161 = vmatprep.subr.bf16.mxu0 0
    %1162 = vmatpush2.bf16.xpose.msra.mxu0 0
    %1163 = vmatprep.subr.bf16.mxu0 0
    %1164 = vmatpush2.bf16.xpose.msra.mxu0 0
    %1165 = vmatprep.mubr.bf16.mxu0 0
    %1166 = vmatmul.mubr.bf16.gmra.mxu0 %v1119
    %v1167 = vpop.f32.mrf.mxu0
    %v1168 = vadd.f32 %v1096, %v1167
    %v1169 = vpop.f32.mrf.mxu0
    %v1170 = vpop.f32.mrf.mxu0
    %v1171 = vadd.f32 %v1096, %v1170
    %v1172 = vpop.f32.mrf.mxu0
    %1173 = vdwg.mxu0
    %v1174 = vmax.f32 %v1168, 0.0
    %v1175 = vmax.f32 %v1171, 0.0
    %v1176 = vpack.c.bf16 %v1175, %v1174
    %s1177 = scalar_lea.vmem %s11, 16
    %v1178 = vld [vmem:[%s1177] sm:$0xf]
    %v1179 = vld [vmem:[%s1177 + $0x4] sm:$0xf]
    %v1180 = vld [vmem:[%s1177 + $0x8] sm:$0xf]
    %v1181 = vld [vmem:[%s1177 + $0xc] sm:$0xf]
    %s1182 = scalar_lea.vmem %s12, 1
    %v1183 = vld [vmem:[%s1182] sm:$0x1]
    %v1185 = vlaneseq
    %v1186 = vshrl.u32 %v1185, 7
    %v1187 = vsub.s32 0, %v1186
    %v1188 = vrot.slane %v1183, %v1187
    %v1194 = vunpack.c.l.b16 %v1178
    %v1195 = vunpack.c.l.b16 %v1179
    %v1196 = vunpack.c.l.b16 %v1180
    %v1197 = vunpack.c.l.b16 %v1181
    %v1198 = vpack.c.b16 %v1195, %v1194
    %v1199 = vpack.c.b16 %v1197, %v1196
    %v1201 = vsel %vm585, %v1176, 0
    %v1204 = vsel %vm585, %v1198, 0
    %v1207 = vsel %vm585, %v1199, 0
    %1209 = vmatprep.subr.bf16.mxu0 0
    %1210 = vmatpush1.bf16.xpose.msra.mxu0 0
    %1211 = vmatprep.subr.bf16.mxu0 0
    %1212 = vmatpush1.bf16.xpose.msra.mxu0 0
    %1213 = vmatprep.subr.bf16.mxu0 0
    %1214 = vmatpush1.bf16.xpose.msra.mxu0 0
    %1215 = vmatprep.subr.bf16.mxu0 0
    %1216 = vmatpush1.bf16.xpose.msra.mxu0 0
    %1217 = vmatprep.subr.bf16.mxu0 0
    %1218 = vmatpush1.bf16.xpose.msra.mxu0 0
    %1219 = vmatprep.subr.bf16.mxu0 0
    %1220 = vmatpush1.bf16.xpose.msra.mxu0 0
    %1221 = vmatprep.subr.bf16.mxu0 0
    %1222 = vmatpush1.bf16.xpose.msra.mxu0 %v1207
    %1223 = vmatprep.subr.bf16.mxu0 0
    %1224 = vmatpush1.bf16.xpose.msra.mxu0 %v1204
    %1225 = vmatprep.subr.bf16.mxu0 0
    %1226 = vmatpush2.bf16.xpose.msra.mxu0 0
    %1227 = vmatprep.subr.bf16.mxu0 0
    %1228 = vmatpush2.bf16.xpose.msra.mxu0 0
    %1229 = vmatprep.subr.bf16.mxu0 0
    %1230 = vmatpush2.bf16.xpose.msra.mxu0 0
    %1231 = vmatprep.subr.bf16.mxu0 0
    %1232 = vmatpush2.bf16.xpose.msra.mxu0 0
    %1233 = vmatprep.subr.bf16.mxu0 0
    %1234 = vmatpush2.bf16.xpose.msra.mxu0 0
    %1235 = vmatprep.subr.bf16.mxu0 0
    %1236 = vmatpush2.bf16.xpose.msra.mxu0 0
    %1237 = vmatprep.subr.bf16.mxu0 0
    %1238 = vmatpush2.bf16.xpose.msra.mxu0 0
    %1239 = vmatprep.subr.bf16.mxu0 0
    %1240 = vmatpush2.bf16.xpose.msra.mxu0 0
    %1241 = vmatprep.mubr.bf16.mxu0 0
    %1242 = vmatmul.mubr.bf16.gmra.mxu0 %v1201
    %v1243 = vpop.f32.mrf.mxu0
    %v1244 = vadd.f32 %v1188, %v1243
    %v1245 = vpop.f32.mrf.mxu0
    %v1246 = vpop.f32.mrf.mxu0
    %v1247 = vadd.f32 %v1188, %v1246
    %v1248 = vpop.f32.mrf.mxu0
    %1249 = vdwg.mxu0
    %v1250 = vadd.f32 %v1244, %v1078
    %v1251 = vadd.f32 %v1247, %v1079
    %s1252 = scalar_lea.vmem %s13, 1
    %v1253 = vld [vmem:[%s1252] sm:$0x1]
    %s1254 = scalar_lea.vmem %s14, 1
    %v1255 = vld [vmem:[%s1254] sm:$0x1]
    %v1256 = vsel %vm77, %v1250, 0.0
    %1257 = vadd.xlane.f32.xlu0 %v1256
    %v1258 = vpop.xlane.xlu0 %1257
    %v1259 = vsel %vm77, %v1251, 0.0
    %1260 = vadd.xlane.f32.xlu0 %v1259
    %v1261 = vpop.xlane.xlu0 %1260
    %v1262 = vmul.f32 %v1258, %v432
    %v1263 = vmul.f32 %v1261, %v432
    %v1264 = vsub.f32 %v1250, %v1262
    %v1265 = vsub.f32 %v1251, %v1263
    %v1266 = vmul.f32 %v1264, %v1264
    %v1267 = vmul.f32 %v1265, %v1265
    %v1268 = vsel %vm77, %v1266, 0.0
    %1269 = vadd.xlane.f32.xlu0 %v1268
    %v1270 = vpop.xlane.xlu0 %1269
    %v1271 = vsel %vm77, %v1267, 0.0
    %1272 = vadd.xlane.f32.xlu0 %v1271
    %v1273 = vpop.xlane.xlu0 %1272
    %v1274 = vmul.f32 %v1270, %v432
    %v1275 = vmul.f32 %v1273, %v432
    %v1276 = vadd.f32 %v1274, 1e-05
    %v1277 = vadd.f32 %v1275, 1e-05
    %v1278 = vrsqrt.pop %v1276
    %v1279 = vrsqrt.pop %v1277
    %v1280 = vmul.f32 %v1264, %v1278
    %v1281 = vmul.f32 %v1265, %v1279
    %v1283 = vlaneseq
    %v1284 = vshrl.u32 %v1283, 7
    %v1285 = vsub.s32 0, %v1284
    %v1286 = vrot.slane %v1253, %v1285
    %v1288 = vmul.f32 %v1280, %v1286
    %v1289 = vmul.f32 %v1281, %v1286
    %v1291 = vlaneseq
    %v1292 = vshrl.u32 %v1291, 7
    %v1293 = vsub.s32 0, %v1292
    %v1294 = vrot.slane %v1255, %v1293
    %v1296 = vadd.f32 %v1288, %v1294
    %v1297 = vadd.f32 %v1289, %v1294
    %1298 = vst.msk [vmem:[#allocation2] sm:$0xff] %vm77, %v1296
    %1299 = vst.msk [vmem:[#allocation2 + $0x8] sm:$0xff] %vm77, %v1297
    // Predicated region
    $region62: #{encoder_forward.1} parent=1 // pred_check
      _
    $region63: #{encoder_forward.1} parent=1 // pred_check_branch
      %1301 = sbr.rel (0) target = $region65
    $region64: #{encoder_forward.1} parent=1 // pred_region
      %s1303 = ssub.s32 256, 256
      %1304 = vsyncadd [#allocation3], %s1303
      %s1305 = sshll.u32 [#allocation2], 4
      %s1306 = int_to_ptr.vmem [resolvable:$true] %s1305
      %1311 = dma.vmem_to_hbm [thread:$0]  %s1306, 256, %s15, [#allocation3], 128, 128, 8
    $region65: #{encoder_forward.1} parent=1 // pred_fallthru
      _
    // Predicated region
    $region66: #{encoder_forward.1} parent=1 // pred_check
      _
    $region67: #{encoder_forward.1} parent=1 // pred_check_branch
      %1313 = sbr.rel (0) target = $region69
    $region68: #{encoder_forward.1} parent=1 // pred_region
      %1314 = dma.done [#allocation3], 256
    $region69: #{encoder_forward.1} parent=1 // pred_fallthru
      _
    %1315 = vsyncpa [#allocation3], 1

</llo_original>
